<compile_context>
chip_gen: v7x
topology: tpu7x:2x2x1
jax: 0.10.0
libtpu: 0.0.40
codegen_flags: <defaults>
</compile_context>

<pallas_src>
import math
from functools import partial

import jax
import jax.numpy as jnp
from jax.experimental import pallas as pl
from jax.experimental.pallas import tpu as pltpu


def _round_up(x, m):
    return (x + m - 1) // m * m


def _pick_images_per_step(n, p_pad, min_steps=2, max_lane_w=8192):
    """Largest divisor B of n keeping >= min_steps grid steps (v7x: 2 TCs)."""
    cap = max(1, max_lane_w // p_pad)
    best = 1
    for b in range(1, min(n, cap) + 1):
        if n % b == 0 and n // b >= min_steps:
            best = b
    return best


def _fused_explainer_kernel(x_ref, w1_ref, b1_ref, w2_ref, b2_ref, mask_ref,
                            o_ref, stack_ref, *, cs1, cs2, wp, lane_w):
    # x_ref    : (1, cs1, lane_w)   channel-padded, SAME-halo, lane-packed input
    # w1_ref   : (cs2, 9*cs1)       im2col weight slab (out-channels padded)
    # w2_ref   : (cout_pad, 9*cs2)
    # b*_ref   : (c, 1)             biases (padded rows are 0)
    # mask_ref : (1, lane_w)        1 at interior pixels, 0 at halo / pad lanes
    # o_ref    : (1, cout_pad, lane_w) lane-dense output
    # stack_ref: (9*max(cs1,cs2), lane_w) im2col scratch; every row-block used
    #            by a layer is fully rewritten, so it never needs zero-init.
    taps = [(ky - 1) * wp + (kx - 1) for ky in range(3) for kx in range(3)]

    # ---- layer 1: 3x3 conv + bias + ReLU (single im2col MXU matmul) ---------
    # One aligned load of the unshifted slab; all 9 taps are lane rotations of
    # it (XLU slot), so there are no unaligned vector loads.
    x0 = x_ref[0]                                            # (cs1, lane_w)
    for t, d in enumerate(taps):
        blk = x0 if d == 0 else pltpu.roll(x0, (-d) % lane_w, axis=1)
        stack_ref[t * cs1:(t + 1) * cs1, :] = blk
    y1 = jnp.dot(w1_ref[...], stack_ref[0:9 * cs1, :],
                 preferred_element_type=jnp.float32)
    # Zero the SAME halo + pad lanes (also kills roll wrap / image-boundary
    # leakage) so layer 2 sees true zero padding.
    y1 = jnp.maximum(y1 + b1_ref[...], 0.0) * mask_ref[...]

    # ---- layer 2: taps come straight from the in-register layer-1 output ----
    for t, d in enumerate(taps):
        blk = y1 if d == 0 else pltpu.roll(y1, (-d) % lane_w, axis=1)
        stack_ref[t * cs2:(t + 1) * cs2, :] = blk
    y2 = jnp.dot(w2_ref[...], stack_ref[0:9 * cs2, :],
                 preferred_element_type=jnp.float32)
    # Halo / pad lanes of y2 are junk; the wrapper crops them.
    o_ref[0] = jnp.maximum(y2 + b2_ref[...], 0.0).astype(o_ref.dtype)


def _build_weight_slab(w_oihw, cs_in, cs_out):
    """(Cout,Cin,3,3) -> (cs_out, 9*cs_in) slab, tap order ky-major / kx-minor."""
    cout, cin, kh, kw = w_oihw.shape
    w = jnp.transpose(w_oihw.astype(jnp.float32), (0, 2, 3, 1))  # (cout,ky,kx,cin)
    w = jnp.pad(w, ((0, cs_out - cout), (0, 0), (0, 0), (0, cs_in - cin)))
    return w.reshape(cs_out, kh * kw * cs_in)


def explainer_forward(x_nchw, params, *, images_per_step=None):
    """Explainer.forward with features = Conv3x3(SAME)+ReLU x2.  NCHW in/out."""
    (w1, b1), (w2, b2) = params
    n, cin, h, w = x_nchw.shape
    cmid, cout = w1.shape[0], w2.shape[0]
    hp, wp = h + 2, w + 2                  # SAME-padded grid
    p = hp * wp                            # flattened padded spatial size
    p_pad = _round_up(p, 128)              # lane-aligned per-image stride
    cs1 = _round_up(cin, 8)                # sublane-aligned channel strides
    cs2 = _round_up(cmid, 8)
    cop = _round_up(cout, 8)

    if images_per_step is None:
        images_per_step = _pick_images_per_step(n, p_pad)
    bsz = images_per_step
    assert n % bsz == 0
    g = n // bsz                           # grid steps (>= 2 kept when possible)
    lane_w = bsz * p_pad

    # Wrapper-side layout: pad channels -> cs1, add 1px SAME halo, flatten
    # spatial, pad lanes -> p_pad, pack `bsz` images side by side on lanes.
    xf = x_nchw.astype(jnp.float32)
    xp = jnp.pad(xf, ((0, 0), (0, cs1 - cin), (1, 1), (1, 1)))
    x_flat = jnp.pad(xp.reshape(n, cs1, p), ((0, 0), (0, 0), (0, p_pad - p)))
    x_pack = x_flat.reshape(g, bsz, cs1, p_pad).transpose(0, 2, 1, 3)
    x_pack = x_pack.reshape(g, cs1, lane_w)

    # interior(1) / halo+pad(0) mask, tiled per packed image
    mask = jnp.pad(jnp.ones((h, w), jnp.float32), ((1, 1), (1, 1))).reshape(1, p)
    mask = jnp.pad(mask, ((0, 0), (0, p_pad - p)))
    mask = jnp.tile(mask, (1, bsz))

    w1s = _build_weight_slab(w1, cs1, cs2)
    w2s = _build_weight_slab(w2, cs2, cop)
    b1c = jnp.pad(b1.astype(jnp.float32), (0, cs2 - cmid)).reshape(cs2, 1)
    b2c = jnp.pad(b2.astype(jnp.float32), (0, cop - cout)).reshape(cop, 1)

    kernel = partial(_fused_explainer_kernel,
                     cs1=cs1, cs2=cs2, wp=wp, lane_w=lane_w)

    out_pack = pl.pallas_call(
        kernel,
        out_shape=jax.ShapeDtypeStruct((g, cop, lane_w), x_nchw.dtype),
        grid_spec=pltpu.PrefetchScalarGridSpec(
            num_scalar_prefetch=0,
            grid=(g,),
            in_specs=[
                pl.BlockSpec((1, cs1, lane_w), lambda i: (i, 0, 0)),
                pl.BlockSpec((cs2, 9 * cs1), lambda i: (0, 0)),
                pl.BlockSpec((cs2, 1), lambda i: (0, 0)),
                pl.BlockSpec((cop, 9 * cs2), lambda i: (0, 0)),
                pl.BlockSpec((cop, 1), lambda i: (0, 0)),
                pl.BlockSpec((1, lane_w), lambda i: (0, 0)),
            ],
            out_specs=pl.BlockSpec((1, cop, lane_w), lambda i: (i, 0, 0)),
            scratch_shapes=[pltpu.VMEM((9 * max(cs1, cs2), lane_w), jnp.float32)],
        ),
        compiler_params=pltpu.CompilerParams(
            dimension_semantics=("parallel",),
        ),
    )(x_pack, w1s, b1c, w2s, b2c, mask)

    # Unpack: (g, cop, bsz*p_pad) -> (n, cout, H, W), cropping the SAME halo.
    out = out_pack.reshape(g, cop, bsz, p_pad).transpose(0, 2, 1, 3)
    out = out.reshape(n, cop, p_pad)[:, :cout, :p].reshape(n, cout, hp, wp)
    return out[:, :, 1:h + 1, 1:w + 1]


def init_conv_params(key, cin, cout, kh=3, kw=3):
    """Matches Explainer._initialize_weights for nn.Conv2d."""
    n = kh * kw * cout
    std = math.sqrt(2.0 / n)
    w_oihw = std * jax.random.normal(key, (cout, cin, kh, kw), dtype=jnp.float32)
    b = jnp.zeros((cout,), dtype=jnp.float32)
    return w_oihw, b


def reference_forward(x_nchw, params):
    """Pure-JAX reference (lax conv, NCHW) for correctness check."""
    out = x_nchw
    for (w_oihw, b) in params:
        out = jax.lax.conv_general_dilated(
            out, w_oihw, window_strides=(1, 1), padding="SAME",
            dimension_numbers=("NCHW", "OIHW", "NCHW"),
        )
        out = out + b[None, :, None, None]
        out = jnp.maximum(out, 0.0)
    return out


if __name__ == "__main__":
    key = jax.random.PRNGKey(0)
    k_x, k_w1, k_w2 = jax.random.split(key, 3)

    N, Cin, H, W = 4, 4, 16, 16
    Cmid, Cout = 8, 8

    x = jax.random.normal(k_x, (N, Cin, H, W), dtype=jnp.float32)
    params = (
        init_conv_params(k_w1, Cin, Cmid),
        init_conv_params(k_w2, Cmid, Cout),
    )

    fwd = jax.jit(explainer_forward)
    out = jax.block_until_ready(fwd(x, params))

    ref = reference_forward(x, params)
    assert out.shape == (N, Cout, H, W)
    assert jnp.allclose(out, ref, atol=1e-4, rtol=1e-4)

    print("KERNEL_OK")
</pallas_src>

<mosaic_0001>
module attributes {stable_mosaic.version = 11 : i64} {
  func.func @_fused_explainer_kernel(%arg0: i32, %arg1: memref<1x8x768xf32, #tpu.memory_space<vmem>>, %arg2: memref<8x72xf32, #tpu.memory_space<vmem>>, %arg3: memref<8x1xf32, #tpu.memory_space<vmem>>, %arg4: memref<8x72xf32, #tpu.memory_space<vmem>>, %arg5: memref<8x1xf32, #tpu.memory_space<vmem>>, %arg6: memref<1x768xf32, #tpu.memory_space<vmem>>, %arg7: memref<1x8x768xf32, #tpu.memory_space<vmem>>, %arg8: memref<72x768xf32, #tpu.memory_space<vmem>>) attributes {dimension_semantics = [#tpu.dimension_semantics<parallel>], iteration_bounds = array<i64: 2>, scalar_prefetch = 0 : i64, scratch_operands = 1 : i64, tpu.core_type = #tpu.core_type<tc>, window_params = [{transform_indices = @transform_0, window_bounds = array<i64: 1, 8, 768>}, {pipeline_mode = #tpu.pipeline_mode<synchronous>, transform_indices = @transform_1, window_bounds = array<i64: 8, 72>}, {pipeline_mode = #tpu.pipeline_mode<synchronous>, transform_indices = @transform_2, window_bounds = array<i64: 8, 1>}, {pipeline_mode = #tpu.pipeline_mode<synchronous>, transform_indices = @transform_3, window_bounds = array<i64: 8, 72>}, {pipeline_mode = #tpu.pipeline_mode<synchronous>, transform_indices = @transform_4, window_bounds = array<i64: 8, 1>}, {pipeline_mode = #tpu.pipeline_mode<synchronous>, transform_indices = @transform_5, window_bounds = array<i64: 1, 768>}, {transform_indices = @transform_6, window_bounds = array<i64: 1, 8, 768>}]} {
    %c0 = arith.constant 0 : index
    %c0_0 = arith.constant 0 : index
    %c0_1 = arith.constant 0 : index
    %0 = vector.load %arg1[%c0, %c0_0, %c0_1] : memref<1x8x768xf32, #tpu.memory_space<vmem>>, vector<1x8x768xf32>
    %1 = vector.shape_cast %0 : vector<1x8x768xf32> to vector<8x768xf32>
    %c19_i32 = arith.constant 19 : i32
    %2 = tpu.dynamic_rotate %1 by %c19_i32 dim 1 : vector<8x768xf32>, i32 -> vector<8x768xf32>
    %c0_2 = arith.constant 0 : index
    %c0_3 = arith.constant 0 : index
    %3 = vector.load %arg8[%c0_2, %c0_3] : memref<72x768xf32, #tpu.memory_space<vmem>>, vector<8x768xf32>
    tpu.vector_store %arg8[%c0_2, %c0_3], %2 {strides = array<i32>} : memref<72x768xf32, #tpu.memory_space<vmem>>, vector<8x768xf32>,
    %c18_i32 = arith.constant 18 : i32
    %4 = tpu.dynamic_rotate %1 by %c18_i32 dim 1 : vector<8x768xf32>, i32 -> vector<8x768xf32>
    %c8 = arith.constant 8 : index
    %c0_4 = arith.constant 0 : index
    %5 = vector.load %arg8[%c8, %c0_4] : memref<72x768xf32, #tpu.memory_space<vmem>>, vector<8x768xf32>
    tpu.vector_store %arg8[%c8, %c0_4], %4 {strides = array<i32>} : memref<72x768xf32, #tpu.memory_space<vmem>>, vector<8x768xf32>,
    %c17_i32 = arith.constant 17 : i32
    %6 = tpu.dynamic_rotate %1 by %c17_i32 dim 1 : vector<8x768xf32>, i32 -> vector<8x768xf32>
    %c16 = arith.constant 16 : index
    %c0_5 = arith.constant 0 : index
    %7 = vector.load %arg8[%c16, %c0_5] : memref<72x768xf32, #tpu.memory_space<vmem>>, vector<8x768xf32>
    tpu.vector_store %arg8[%c16, %c0_5], %6 {strides = array<i32>} : memref<72x768xf32, #tpu.memory_space<vmem>>, vector<8x768xf32>,
    %c1_i32 = arith.constant 1 : i32
    %8 = tpu.dynamic_rotate %1 by %c1_i32 dim 1 : vector<8x768xf32>, i32 -> vector<8x768xf32>
    %c24 = arith.constant 24 : index
    %c0_6 = arith.constant 0 : index
    %9 = vector.load %arg8[%c24, %c0_6] : memref<72x768xf32, #tpu.memory_space<vmem>>, vector<8x768xf32>
    tpu.vector_store %arg8[%c24, %c0_6], %8 {strides = array<i32>} : memref<72x768xf32, #tpu.memory_space<vmem>>, vector<8x768xf32>,
    %c32 = arith.constant 32 : index
    %c0_7 = arith.constant 0 : index
    %10 = vector.load %arg8[%c32, %c0_7] : memref<72x768xf32, #tpu.memory_space<vmem>>, vector<8x768xf32>
    tpu.vector_store %arg8[%c32, %c0_7], %1 {strides = array<i32>} : memref<72x768xf32, #tpu.memory_space<vmem>>, vector<8x768xf32>,
    %c767_i32 = arith.constant 767 : i32
    %11 = tpu.dynamic_rotate %1 by %c767_i32 dim 1 : vector<8x768xf32>, i32 -> vector<8x768xf32>
    %c40 = arith.constant 40 : index
    %c0_8 = arith.constant 0 : index
    %12 = vector.load %arg8[%c40, %c0_8] : memref<72x768xf32, #tpu.memory_space<vmem>>, vector<8x768xf32>
    tpu.vector_store %arg8[%c40, %c0_8], %11 {strides = array<i32>} : memref<72x768xf32, #tpu.memory_space<vmem>>, vector<8x768xf32>,
    %c751_i32 = arith.constant 751 : i32
    %13 = tpu.dynamic_rotate %1 by %c751_i32 dim 1 : vector<8x768xf32>, i32 -> vector<8x768xf32>
    %c48 = arith.constant 48 : index
    %c0_9 = arith.constant 0 : index
    %14 = vector.load %arg8[%c48, %c0_9] : memref<72x768xf32, #tpu.memory_space<vmem>>, vector<8x768xf32>
    tpu.vector_store %arg8[%c48, %c0_9], %13 {strides = array<i32>} : memref<72x768xf32, #tpu.memory_space<vmem>>, vector<8x768xf32>,
    %c750_i32 = arith.constant 750 : i32
    %15 = tpu.dynamic_rotate %1 by %c750_i32 dim 1 : vector<8x768xf32>, i32 -> vector<8x768xf32>
    %c56 = arith.constant 56 : index
    %c0_10 = arith.constant 0 : index
    %16 = vector.load %arg8[%c56, %c0_10] : memref<72x768xf32, #tpu.memory_space<vmem>>, vector<8x768xf32>
    tpu.vector_store %arg8[%c56, %c0_10], %15 {strides = array<i32>} : memref<72x768xf32, #tpu.memory_space<vmem>>, vector<8x768xf32>,
    %c749_i32 = arith.constant 749 : i32
    %17 = tpu.dynamic_rotate %1 by %c749_i32 dim 1 : vector<8x768xf32>, i32 -> vector<8x768xf32>
    %c64 = arith.constant 64 : index
    %c0_11 = arith.constant 0 : index
    %18 = vector.load %arg8[%c64, %c0_11] : memref<72x768xf32, #tpu.memory_space<vmem>>, vector<8x768xf32>
    tpu.vector_store %arg8[%c64, %c0_11], %17 {strides = array<i32>} : memref<72x768xf32, #tpu.memory_space<vmem>>, vector<8x768xf32>,
    %c0_12 = arith.constant 0 : index
    %c0_13 = arith.constant 0 : index
    %19 = vector.load %arg2[%c0_12, %c0_13] : memref<8x72xf32, #tpu.memory_space<vmem>>, vector<8x72xf32>
    %c0_14 = arith.constant 0 : index
    %c0_15 = arith.constant 0 : index
    %20 = vector.load %arg8[%c0_14, %c0_15] : memref<72x768xf32, #tpu.memory_space<vmem>>, vector<72x768xf32>
    %cst = arith.constant dense<0.000000e+00> : vector<8x768xf32>
    %21 = tpu.matmul %19, %20, %cst {dimension_numbers = #tpu.dot_dimension_numbers<[1], [0], [0], [1], [0, 0, 1, 1], [], []>} : vector<8x72xf32>, vector<72x768xf32>, vector<8x768xf32> -> vector<8x768xf32>
    %c0_16 = arith.constant 0 : index
    %c0_17 = arith.constant 0 : index
    %22 = vector.load %arg3[%c0_16, %c0_17] : memref<8x1xf32, #tpu.memory_space<vmem>>, vector<8x1xf32>
    %23 = vector.broadcast %22 : vector<8x1xf32> to vector<8x768xf32>
    %24 = arith.addf %21, %23 : vector<8x768xf32>
    %cst_18 = arith.constant 0.000000e+00 : f32
    %25 = vector.broadcast %cst_18 : f32 to vector<8x768xf32>
    %26 = arith.maximumf %24, %25 : vector<8x768xf32>
    %c0_19 = arith.constant 0 : index
    %c0_20 = arith.constant 0 : index
    %27 = vector.load %arg6[%c0_19, %c0_20] : memref<1x768xf32, #tpu.memory_space<vmem>>, vector<1x768xf32>
    %28 = vector.broadcast %27 : vector<1x768xf32> to vector<8x768xf32>
    %29 = arith.mulf %26, %28 : vector<8x768xf32>
    %c19_i32_21 = arith.constant 19 : i32
    %30 = tpu.dynamic_rotate %29 by %c19_i32_21 dim 1 : vector<8x768xf32>, i32 -> vector<8x768xf32>
    %c0_22 = arith.constant 0 : index
    %c0_23 = arith.constant 0 : index
    %31 = vector.load %arg8[%c0_22, %c0_23] : memref<72x768xf32, #tpu.memory_space<vmem>>, vector<8x768xf32>
    tpu.vector_store %arg8[%c0_22, %c0_23], %30 {strides = array<i32>} : memref<72x768xf32, #tpu.memory_space<vmem>>, vector<8x768xf32>,
    %c18_i32_24 = arith.constant 18 : i32
    %32 = tpu.dynamic_rotate %29 by %c18_i32_24 dim 1 : vector<8x768xf32>, i32 -> vector<8x768xf32>
    %c8_25 = arith.constant 8 : index
    %c0_26 = arith.constant 0 : index
    %33 = vector.load %arg8[%c8_25, %c0_26] : memref<72x768xf32, #tpu.memory_space<vmem>>, vector<8x768xf32>
    tpu.vector_store %arg8[%c8_25, %c0_26], %32 {strides = array<i32>} : memref<72x768xf32, #tpu.memory_space<vmem>>, vector<8x768xf32>,
    %c17_i32_27 = arith.constant 17 : i32
    %34 = tpu.dynamic_rotate %29 by %c17_i32_27 dim 1 : vector<8x768xf32>, i32 -> vector<8x768xf32>
    %c16_28 = arith.constant 16 : index
    %c0_29 = arith.constant 0 : index
    %35 = vector.load %arg8[%c16_28, %c0_29] : memref<72x768xf32, #tpu.memory_space<vmem>>, vector<8x768xf32>
    tpu.vector_store %arg8[%c16_28, %c0_29], %34 {strides = array<i32>} : memref<72x768xf32, #tpu.memory_space<vmem>>, vector<8x768xf32>,
    %c1_i32_30 = arith.constant 1 : i32
    %36 = tpu.dynamic_rotate %29 by %c1_i32_30 dim 1 : vector<8x768xf32>, i32 -> vector<8x768xf32>
    %c24_31 = arith.constant 24 : index
    %c0_32 = arith.constant 0 : index
    %37 = vector.load %arg8[%c24_31, %c0_32] : memref<72x768xf32, #tpu.memory_space<vmem>>, vector<8x768xf32>
    tpu.vector_store %arg8[%c24_31, %c0_32], %36 {strides = array<i32>} : memref<72x768xf32, #tpu.memory_space<vmem>>, vector<8x768xf32>,
    %c32_33 = arith.constant 32 : index
    %c0_34 = arith.constant 0 : index
    %38 = vector.load %arg8[%c32_33, %c0_34] : memref<72x768xf32, #tpu.memory_space<vmem>>, vector<8x768xf32>
    tpu.vector_store %arg8[%c32_33, %c0_34], %29 {strides = array<i32>} : memref<72x768xf32, #tpu.memory_space<vmem>>, vector<8x768xf32>,
    %c767_i32_35 = arith.constant 767 : i32
    %39 = tpu.dynamic_rotate %29 by %c767_i32_35 dim 1 : vector<8x768xf32>, i32 -> vector<8x768xf32>
    %c40_36 = arith.constant 40 : index
    %c0_37 = arith.constant 0 : index
    %40 = vector.load %arg8[%c40_36, %c0_37] : memref<72x768xf32, #tpu.memory_space<vmem>>, vector<8x768xf32>
    tpu.vector_store %arg8[%c40_36, %c0_37], %39 {strides = array<i32>} : memref<72x768xf32, #tpu.memory_space<vmem>>, vector<8x768xf32>,
    %c751_i32_38 = arith.constant 751 : i32
    %41 = tpu.dynamic_rotate %29 by %c751_i32_38 dim 1 : vector<8x768xf32>, i32 -> vector<8x768xf32>
    %c48_39 = arith.constant 48 : index
    %c0_40 = arith.constant 0 : index
    %42 = vector.load %arg8[%c48_39, %c0_40] : memref<72x768xf32, #tpu.memory_space<vmem>>, vector<8x768xf32>
    tpu.vector_store %arg8[%c48_39, %c0_40], %41 {strides = array<i32>} : memref<72x768xf32, #tpu.memory_space<vmem>>, vector<8x768xf32>,
    %c750_i32_41 = arith.constant 750 : i32
    %43 = tpu.dynamic_rotate %29 by %c750_i32_41 dim 1 : vector<8x768xf32>, i32 -> vector<8x768xf32>
    %c56_42 = arith.constant 56 : index
    %c0_43 = arith.constant 0 : index
    %44 = vector.load %arg8[%c56_42, %c0_43] : memref<72x768xf32, #tpu.memory_space<vmem>>, vector<8x768xf32>
    tpu.vector_store %arg8[%c56_42, %c0_43], %43 {strides = array<i32>} : memref<72x768xf32, #tpu.memory_space<vmem>>, vector<8x768xf32>,
    %c749_i32_44 = arith.constant 749 : i32
    %45 = tpu.dynamic_rotate %29 by %c749_i32_44 dim 1 : vector<8x768xf32>, i32 -> vector<8x768xf32>
    %c64_45 = arith.constant 64 : index
    %c0_46 = arith.constant 0 : index
    %46 = vector.load %arg8[%c64_45, %c0_46] : memref<72x768xf32, #tpu.memory_space<vmem>>, vector<8x768xf32>
    tpu.vector_store %arg8[%c64_45, %c0_46], %45 {strides = array<i32>} : memref<72x768xf32, #tpu.memory_space<vmem>>, vector<8x768xf32>,
    %c0_47 = arith.constant 0 : index
    %c0_48 = arith.constant 0 : index
    %47 = vector.load %arg4[%c0_47, %c0_48] : memref<8x72xf32, #tpu.memory_space<vmem>>, vector<8x72xf32>
    %c0_49 = arith.constant 0 : index
    %c0_50 = arith.constant 0 : index
    %48 = vector.load %arg8[%c0_49, %c0_50] : memref<72x768xf32, #tpu.memory_space<vmem>>, vector<72x768xf32>
    %cst_51 = arith.constant dense<0.000000e+00> : vector<8x768xf32>
    %49 = tpu.matmul %47, %48, %cst_51 {dimension_numbers = #tpu.dot_dimension_numbers<[1], [0], [0], [1], [0, 0, 1, 1], [], []>} : vector<8x72xf32>, vector<72x768xf32>, vector<8x768xf32> -> vector<8x768xf32>
    %c0_52 = arith.constant 0 : index
    %c0_53 = arith.constant 0 : index
    %50 = vector.load %arg5[%c0_52, %c0_53] : memref<8x1xf32, #tpu.memory_space<vmem>>, vector<8x1xf32>
    %51 = vector.broadcast %50 : vector<8x1xf32> to vector<8x768xf32>
    %52 = arith.addf %49, %51 : vector<8x768xf32>
    %cst_54 = arith.constant 0.000000e+00 : f32
    %53 = vector.broadcast %cst_54 : f32 to vector<8x768xf32>
    %54 = arith.maximumf %52, %53 : vector<8x768xf32>
    %c0_55 = arith.constant 0 : index
    %c0_56 = arith.constant 0 : index
    %c0_57 = arith.constant 0 : index
    %55 = vector.load %arg7[%c0_55, %c0_56, %c0_57] : memref<1x8x768xf32, #tpu.memory_space<vmem>>, vector<1x8x768xf32>
    %56 = vector.shape_cast %55 : vector<1x8x768xf32> to vector<8x768xf32>
    %57 = vector.shape_cast %54 : vector<8x768xf32> to vector<1x8x768xf32>
    tpu.vector_store %arg7[%c0_55, %c0_56, %c0_57], %57 {strides = array<i32>} : memref<1x8x768xf32, #tpu.memory_space<vmem>>, vector<1x8x768xf32>,
    return
  }
  func.func @transform_0(%arg0: i32) -> (i32, i32, i32) {
    %c0_i32 = arith.constant 0 : i32
    %c0_i32_0 = arith.constant 0 : i32
    %c0_i32_1 = arith.constant 0 : i32
    return %arg0, %c0_i32, %c0_i32_0 : i32, i32, i32
  }
  func.func @transform_1(%arg0: i32) -> (i32, i32) {
    %c0_i32 = arith.constant 0 : i32
    %c0_i32_0 = arith.constant 0 : i32
    %c0_i32_1 = arith.constant 0 : i32
    return %c0_i32, %c0_i32_0 : i32, i32
  }
  func.func @transform_2(%arg0: i32) -> (i32, i32) {
    %c0_i32 = arith.constant 0 : i32
    %c0_i32_0 = arith.constant 0 : i32
    %c0_i32_1 = arith.constant 0 : i32
    return %c0_i32, %c0_i32_0 : i32, i32
  }
  func.func @transform_3(%arg0: i32) -> (i32, i32) {
    %c0_i32 = arith.constant 0 : i32
    %c0_i32_0 = arith.constant 0 : i32
    %c0_i32_1 = arith.constant 0 : i32
    return %c0_i32, %c0_i32_0 : i32, i32
  }
  func.func @transform_4(%arg0: i32) -> (i32, i32) {
    %c0_i32 = arith.constant 0 : i32
    %c0_i32_0 = arith.constant 0 : i32
    %c0_i32_1 = arith.constant 0 : i32
    return %c0_i32, %c0_i32_0 : i32, i32
  }
  func.func @transform_5(%arg0: i32) -> (i32, i32) {
    %c0_i32 = arith.constant 0 : i32
    %c0_i32_0 = arith.constant 0 : i32
    %c0_i32_1 = arith.constant 0 : i32
    return %c0_i32, %c0_i32_0 : i32, i32
  }
  func.func @transform_6(%arg0: i32) -> (i32, i32, i32) {
    %c0_i32 = arith.constant 0 : i32
    %c0_i32_0 = arith.constant 0 : i32
    %c0_i32_1 = arith.constant 0 : i32
    return %arg0, %c0_i32, %c0_i32_0 : i32, i32, i32
  }
}

</mosaic_0001>

<llo_original>
// kernel: explainer_forward.1
$region0: #{explainer_forward.1}
  #allocation0 [shape = 'u32[]', space=smem, size = 0x4, offset = 0x4, fixed_abs, tag = 'smem constant byte address 0x4 - core index']
  #allocation1 [shape = 'u32[144,128]{1,0:T(1,128)}', space=vmem, size = 0x12000, scoped, tag = 'internal scratch']
  #allocation2 [shape = 'f32[72,768]{1,0:T(8,128)}', space=vmem, size = 0x36000, scoped, tag = 'scratch operand']
  %s0 = inlined_call_operand.vmem [shape: f32[2,8,768], index: 0, kind: input, shape index: {}]
  %s1 = inlined_call_operand.vmem [shape: f32[8,72], index: 1, kind: input, shape index: {}]
  %s2 = inlined_call_operand.vmem [shape: f32[8,1], index: 2, kind: input, shape index: {}]
  %s3 = inlined_call_operand.vmem [shape: f32[8,72], index: 3, kind: input, shape index: {}]
  %s4 = inlined_call_operand.vmem [shape: f32[8,1], index: 4, kind: input, shape index: {}]
  %s5 = inlined_call_operand.vmem [shape: f32[1,768], index: 5, kind: input, shape index: {}]
  %s6 = inlined_call_operand.vmem [shape: f32[2,8,768], index: 6, kind: output, shape index: {}]
  %s7 = sld [smem:[#allocation0]]
  $region57: #{explainer_forward.1} parent=0
    _
  %s9 = ssub.s32 1, %s7
  %s10 = scalar_select 0, %s9, %s7
  loop: start=0, step=1, limit=4
  $region2: #{explainer_forward.1} parent=0 // loop_pre_header
    _
  $region3: #{explainer_forward.1} parent=0 // loop_header
    %s12 = sphi 0, %s16
    %p13 = scmp.ge.s32.totalorder %s12, 4
    %s22 = sphi 0, %s24
    %s25 = sphi 0, %s22
    %s26 = sphi 0, %s25
    %s42 = sphi 0, %s26
    %s46 = sphi 0, %s46
    %s48 = sphi 0, %s46
    %s49 = sphi 0, %s48
    %s63 = sphi 0, %s49
    %s67 = sphi 0, %s67
    %s69 = sphi 0, %s67
    %s70 = sphi 0, %s69
    %s84 = sphi 0, %s70
    %s88 = sphi 0, %s88
    %s90 = sphi 0, %s88
    %s91 = sphi 0, %s90
    %s105 = sphi 0, %s91
    %s109 = sphi 0, %s109
    %s111 = sphi 0, %s109
    %s112 = sphi 0, %s111
    %s126 = sphi 0, %s112
    %s130 = sphi 0, %s130
    %s132 = sphi 0, %s130
    %s133 = sphi 0, %s132
    %s147 = sphi 0, %s133
    %s153 = sphi 0, %s155
    %s156 = sphi 0, %s153
    %s157 = sphi 0, %s156
    %s173 = sphi 0, %s157
  $region4: #{explainer_forward.1} parent=0 // loop_header_branch
    %15 = sbr.rel (%p13) target = $region8
  $region5: #{explainer_forward.1} parent=0 // loop_body
    %s17 = ssub.s32 %s12, 1
    %s18 = ssub.s32 %s12, 2
    %s19 = sadd.s32 %s12, 1
    %s20 = ssub.s32 %s12, %s19
    %p21 = scmp.eq.s32.totalorder %s20, 0
    %s23 = sadd.s32 %s22, 1
    %s24 = scalar_select %p21, %s22, %s23
    %p27 = pneg %p21
    %p28 = scmp.eq.s32.totalorder %s12, 1
    %p29 = por %p27, %p28
    %p30 = scmp.ne.s32.totalorder %s22, %s25
    %p31 = scmp.eq.s32.totalorder %s12, 0
    %p32 = por %p30, %p31
    %p33 = scmp.ne.s32.totalorder %s22, %s25
    %p34 = scmp.eq.s32.totalorder %s17, 1
    %p35 = por %p33, %p34
    %p36 = scmp.ne.s32.totalorder %s25, %s26
    %p37 = scmp.eq.s32.totalorder %s17, 0
    %p38 = por %p36, %p37
    %p39 = scmp.ne.s32.totalorder %s25, %s26
    %p40 = scmp.eq.s32.totalorder %s18, 1
    %p41 = por %p39, %p40
    %p43 = scmp.ne.s32.totalorder %s26, %s42
    %p44 = scmp.eq.s32.totalorder %s18, 0
    %p45 = por %p43, %p44
    %s47 = sadd.s32 %s46, 1
    %p50 = scmp.eq.s32.totalorder %s12, 1
    %p51 = scmp.ne.s32.totalorder %s46, %s48
    %p52 = scmp.eq.s32.totalorder %s12, 0
    %p53 = por %p51, %p52
    %p54 = scmp.ne.s32.totalorder %s46, %s48
    %p55 = scmp.eq.s32.totalorder %s17, 1
    %p56 = por %p54, %p55
    %p57 = scmp.ne.s32.totalorder %s48, %s49
    %p58 = scmp.eq.s32.totalorder %s17, 0
    %p59 = por %p57, %p58
    %p60 = scmp.ne.s32.totalorder %s48, %s49
    %p61 = scmp.eq.s32.totalorder %s18, 1
    %p62 = por %p60, %p61
    %p64 = scmp.ne.s32.totalorder %s49, %s63
    %p65 = scmp.eq.s32.totalorder %s18, 0
    %p66 = por %p64, %p65
    %s68 = sadd.s32 %s67, 1
    %p71 = scmp.eq.s32.totalorder %s12, 1
    %p72 = scmp.ne.s32.totalorder %s67, %s69
    %p73 = scmp.eq.s32.totalorder %s12, 0
    %p74 = por %p72, %p73
    %p75 = scmp.ne.s32.totalorder %s67, %s69
    %p76 = scmp.eq.s32.totalorder %s17, 1
    %p77 = por %p75, %p76
    %p78 = scmp.ne.s32.totalorder %s69, %s70
    %p79 = scmp.eq.s32.totalorder %s17, 0
    %p80 = por %p78, %p79
    %p81 = scmp.ne.s32.totalorder %s69, %s70
    %p82 = scmp.eq.s32.totalorder %s18, 1
    %p83 = por %p81, %p82
    %p85 = scmp.ne.s32.totalorder %s70, %s84
    %p86 = scmp.eq.s32.totalorder %s18, 0
    %p87 = por %p85, %p86
    %s89 = sadd.s32 %s88, 1
    %p92 = scmp.eq.s32.totalorder %s12, 1
    %p93 = scmp.ne.s32.totalorder %s88, %s90
    %p94 = scmp.eq.s32.totalorder %s12, 0
    %p95 = por %p93, %p94
    %p96 = scmp.ne.s32.totalorder %s88, %s90
    %p97 = scmp.eq.s32.totalorder %s17, 1
    %p98 = por %p96, %p97
    %p99 = scmp.ne.s32.totalorder %s90, %s91
    %p100 = scmp.eq.s32.totalorder %s17, 0
    %p101 = por %p99, %p100
    %p102 = scmp.ne.s32.totalorder %s90, %s91
    %p103 = scmp.eq.s32.totalorder %s18, 1
    %p104 = por %p102, %p103
    %p106 = scmp.ne.s32.totalorder %s91, %s105
    %p107 = scmp.eq.s32.totalorder %s18, 0
    %p108 = por %p106, %p107
    %s110 = sadd.s32 %s109, 1
    %p113 = scmp.eq.s32.totalorder %s12, 1
    %p114 = scmp.ne.s32.totalorder %s109, %s111
    %p115 = scmp.eq.s32.totalorder %s12, 0
    %p116 = por %p114, %p115
    %p117 = scmp.ne.s32.totalorder %s109, %s111
    %p118 = scmp.eq.s32.totalorder %s17, 1
    %p119 = por %p117, %p118
    %p120 = scmp.ne.s32.totalorder %s111, %s112
    %p121 = scmp.eq.s32.totalorder %s17, 0
    %p122 = por %p120, %p121
    %p123 = scmp.ne.s32.totalorder %s111, %s112
    %p124 = scmp.eq.s32.totalorder %s18, 1
    %p125 = por %p123, %p124
    %p127 = scmp.ne.s32.totalorder %s112, %s126
    %p128 = scmp.eq.s32.totalorder %s18, 0
    %p129 = por %p127, %p128
    %s131 = sadd.s32 %s130, 1
    %p134 = scmp.eq.s32.totalorder %s12, 1
    %p135 = scmp.ne.s32.totalorder %s130, %s132
    %p136 = scmp.eq.s32.totalorder %s12, 0
    %p137 = por %p135, %p136
    %p138 = scmp.ne.s32.totalorder %s130, %s132
    %p139 = scmp.eq.s32.totalorder %s17, 1
    %p140 = por %p138, %p139
    %p141 = scmp.ne.s32.totalorder %s132, %s133
    %p142 = scmp.eq.s32.totalorder %s17, 0
    %p143 = por %p141, %p142
    %p144 = scmp.ne.s32.totalorder %s132, %s133
    %p145 = scmp.eq.s32.totalorder %s18, 1
    %p146 = por %p144, %p145
    %p148 = scmp.ne.s32.totalorder %s133, %s147
    %p149 = scmp.eq.s32.totalorder %s18, 0
    %p150 = por %p148, %p149
    %s151 = ssub.s32 %s12, %s19
    %p152 = scmp.eq.s32.totalorder %s151, 0
    %s154 = sadd.s32 %s153, 1
    %s155 = scalar_select %p152, %s153, %s154
    %p158 = pneg %p152
    %p159 = scmp.eq.s32.totalorder %s12, 1
    %p160 = por %p158, %p159
    %p161 = scmp.ne.s32.totalorder %s153, %s156
    %p162 = scmp.eq.s32.totalorder %s12, 0
    %p163 = por %p161, %p162
    %p164 = scmp.ne.s32.totalorder %s153, %s156
    %p165 = scmp.eq.s32.totalorder %s17, 1
    %p166 = por %p164, %p165
    %p167 = scmp.ne.s32.totalorder %s156, %s157
    %p168 = scmp.eq.s32.totalorder %s17, 0
    %p169 = por %p167, %p168
    %p170 = scmp.ne.s32.totalorder %s156, %s157
    %p171 = scmp.eq.s32.totalorder %s18, 1
    %p172 = por %p170, %p171
    %p174 = scmp.ne.s32.totalorder %s157, %s173
    %p175 = scmp.eq.s32.totalorder %s18, 0
    %p176 = por %p174, %p175
    %p177 = scmp.le.s32.totalorder 1, %s12
    %p178 = scmp.lt.s32.totalorder %s12, 3
    %p179 = pnand %p177, %p178
    %p180 = pneg %p179
    // Predicated region
    $region9: #{explainer_forward.1} parent=5 // pred_check
      _
    $region10: #{explainer_forward.1} parent=5 // pred_check_branch
      %182 = sbr.rel (%p179) target = $region12
    $region11: #{explainer_forward.1} parent=5 // pred_region
      %s183 = ssub.s32 %s12, 1
      // Predicated region
      $region13: #{explainer_forward.1} parent=11 // pred_check
        %p184 = pneg %p59
      $region14: #{explainer_forward.1} parent=11 // pred_check_branch
        %186 = sbr.rel (%p184) target = $region16
      $region15: #{explainer_forward.1} parent=11 // pred_region
        _
      $region16: #{explainer_forward.1} parent=11 // pred_fallthru
        _
      // Predicated region
      $region17: #{explainer_forward.1} parent=11 // pred_check
        %p187 = pneg %p80
      $region18: #{explainer_forward.1} parent=11 // pred_check_branch
        %189 = sbr.rel (%p187) target = $region20
      $region19: #{explainer_forward.1} parent=11 // pred_region
        _
      $region20: #{explainer_forward.1} parent=11 // pred_fallthru
        _
      // Predicated region
      $region21: #{explainer_forward.1} parent=11 // pred_check
        %p190 = pneg %p101
      $region22: #{explainer_forward.1} parent=11 // pred_check_branch
        %192 = sbr.rel (%p190) target = $region24
      $region23: #{explainer_forward.1} parent=11 // pred_region
        _
      $region24: #{explainer_forward.1} parent=11 // pred_fallthru
        _
      // Predicated region
      $region25: #{explainer_forward.1} parent=11 // pred_check
        %p193 = pneg %p122
      $region26: #{explainer_forward.1} parent=11 // pred_check_branch
        %195 = sbr.rel (%p193) target = $region28
      $region27: #{explainer_forward.1} parent=11 // pred_region
        _
      $region28: #{explainer_forward.1} parent=11 // pred_fallthru
        _
      // Predicated region
      $region29: #{explainer_forward.1} parent=11 // pred_check
        %p196 = pneg %p143
      $region30: #{explainer_forward.1} parent=11 // pred_check_branch
        %198 = sbr.rel (%p196) target = $region32
      $region31: #{explainer_forward.1} parent=11 // pred_region
        _
      $region32: #{explainer_forward.1} parent=11 // pred_fallthru
        _
    $region12: #{explainer_forward.1} parent=5 // pred_fallthru
      _
    %p199 = scmp.lt.s32.totalorder %s12, 2
    // Predicated region
    $region33: #{explainer_forward.1} parent=5 // pred_check
      %p200 = pneg %p199
    $region34: #{explainer_forward.1} parent=5 // pred_check_branch
      %202 = sbr.rel (%p200) target = $region36
    $region35: #{explainer_forward.1} parent=5 // pred_region
      // Predicated region
      $region37: #{explainer_forward.1} parent=35 // pred_check
        %p203 = pneg %p32
      $region38: #{explainer_forward.1} parent=35 // pred_check_branch
        %205 = sbr.rel (%p203) target = $region40
      $region39: #{explainer_forward.1} parent=35 // pred_region
        %p206 = scmp.lt.s32.totalorder %s12, 1
        %s207 = scalar_select %p206, %s12, 1
        %s208 = smul.addr %s207, 6
        %s209 = smul.addr %s208, 8
        %s210 = scalar_lea.vmem %s0, %s209
      $region40: #{explainer_forward.1} parent=35 // pred_fallthru
        _
    $region36: #{explainer_forward.1} parent=5 // pred_fallthru
      _
    %p211 = scmp.le.s32.totalorder 1, %s12
    %p212 = scmp.lt.s32.totalorder %s12, 3
    %p213 = pnand %p211, %p212
    %p214 = pneg %p213
    // Predicated region
    $region41: #{explainer_forward.1} parent=5 // pred_check
      _
    $region42: #{explainer_forward.1} parent=5 // pred_check_branch
      %216 = sbr.rel (%p213) target = $region44
    $region43: #{explainer_forward.1} parent=5 // pred_region
      %s217 = ssub.s32 %s12, 1
      %p218 = scmp.lt.s32.totalorder %s17, 1
      %s219 = scalar_select %p218, %s17, 1
      %s220 = smul.addr %s219, 6
      %s221 = smul.addr %s220, 8
      %s222 = scalar_lea.vmem %s0, %s221
      %p223 = pneg %p38
      %p224 = pneg %p35
      %p225 = pneg %p59
      %p226 = pneg %p56
      %p227 = pneg %p80
      %p228 = pneg %p77
      %p229 = pneg %p101
      %p230 = pneg %p98
      %p231 = pneg %p122
      %p232 = pneg %p119
      %p233 = pneg %p143
      %p234 = pneg %p140
      %p235 = pneg %p169
      %p236 = pneg %p166
      %p237 = scmp.lt.s32.totalorder %s17, 1
      %s238 = scalar_select %p237, %s17, 1
      %s239 = smul.addr %s238, 6
      %s240 = smul.addr %s239, 8
      %s241 = scalar_lea.vmem %s6, %s240
      %p242 = scmp.lt.s32.totalorder %s17, 1
      %s243 = scalar_select %p242, %s17, 1
      %s244 = smul.addr %s243, 6
      %s245 = smul.addr %s244, 8
      %s246 = scalar_lea.vmem %s0, %s245
      %p247 = scmp.lt.s32.totalorder %s17, 1
      %s248 = scalar_select %p247, %s17, 1
      %s249 = smul.addr %s248, 6
      %s250 = smul.addr %s249, 8
      %s251 = scalar_lea.vmem %s6, %s250
      %v252 = vld [vmem:[%s246] sm:$0xff]
      %v253 = vld [vmem:[%s246 + $0x8] sm:$0xff]
      %v254 = vld [vmem:[%s246 + $0x10] sm:$0xff]
      %v255 = vld [vmem:[%s246 + $0x18] sm:$0xff]
      %v256 = vld [vmem:[%s246 + $0x20] sm:$0xff]
      %v257 = vld [vmem:[%s246 + $0x28] sm:$0xff]
      %258 = vrot.lane.b32.xlu0 %v252, 19
      %v259 = vpop.permute.xlu0 %258
      %260 = vrot.lane.b32.xlu0 %v253, 19
      %v261 = vpop.permute.xlu0 %260
      %262 = vrot.lane.b32.xlu0 %v254, 19
      %v263 = vpop.permute.xlu0 %262
      %264 = vrot.lane.b32.xlu0 %v255, 19
      %v265 = vpop.permute.xlu0 %264
      %266 = vrot.lane.b32.xlu0 %v256, 19
      %v267 = vpop.permute.xlu0 %266
      %268 = vrot.lane.b32.xlu0 %v257, 19
      %v269 = vpop.permute.xlu0 %268
      %v270 = vlaneseq
      %v271 = vand.u32 %v270, 127
      %vm272 = vcmp.lt.s32.totalorder %v271, 19
      %v273 = vsel %vm272, %v267, %v269
      %v274 = vsel %vm272, %v265, %v267
      %v275 = vsel %vm272, %v263, %v265
      %v276 = vsel %vm272, %v261, %v263
      %v277 = vsel %vm272, %v259, %v261
      %v278 = vsel %vm272, %v269, %v259
      %279 = vst [vmem:[#allocation2] sm:$0xff] %v278
      %280 = vst [vmem:[#allocation2 + $0x8] sm:$0xff] %v277
      %281 = vst [vmem:[#allocation2 + $0x10] sm:$0xff] %v276
      %282 = vst [vmem:[#allocation2 + $0x18] sm:$0xff] %v275
      %283 = vst [vmem:[#allocation2 + $0x20] sm:$0xff] %v274
      %284 = vst [vmem:[#allocation2 + $0x28] sm:$0xff] %v273
      %285 = vrot.lane.b32.xlu0 %v252, 18
      %v286 = vpop.permute.xlu0 %285
      %287 = vrot.lane.b32.xlu0 %v253, 18
      %v288 = vpop.permute.xlu0 %287
      %289 = vrot.lane.b32.xlu0 %v254, 18
      %v290 = vpop.permute.xlu0 %289
      %291 = vrot.lane.b32.xlu0 %v255, 18
      %v292 = vpop.permute.xlu0 %291
      %293 = vrot.lane.b32.xlu0 %v256, 18
      %v294 = vpop.permute.xlu0 %293
      %295 = vrot.lane.b32.xlu0 %v257, 18
      %v296 = vpop.permute.xlu0 %295
      %vm297 = vcmp.lt.s32.totalorder %v271, 18
      %v298 = vsel %vm297, %v294, %v296
      %v299 = vsel %vm297, %v292, %v294
      %v300 = vsel %vm297, %v290, %v292
      %v301 = vsel %vm297, %v288, %v290
      %v302 = vsel %vm297, %v286, %v288
      %v303 = vsel %vm297, %v296, %v286
      %304 = vst [vmem:[#allocation2 + $0x30] sm:$0xff] %v303
      %305 = vst [vmem:[#allocation2 + $0x38] sm:$0xff] %v302
      %306 = vst [vmem:[#allocation2 + $0x40] sm:$0xff] %v301
      %307 = vst [vmem:[#allocation2 + $0x48] sm:$0xff] %v300
      %308 = vst [vmem:[#allocation2 + $0x50] sm:$0xff] %v299
      %309 = vst [vmem:[#allocation2 + $0x58] sm:$0xff] %v298
      %310 = vrot.lane.b32.xlu0 %v252, 17
      %v311 = vpop.permute.xlu0 %310
      %312 = vrot.lane.b32.xlu0 %v253, 17
      %v313 = vpop.permute.xlu0 %312
      %314 = vrot.lane.b32.xlu0 %v254, 17
      %v315 = vpop.permute.xlu0 %314
      %316 = vrot.lane.b32.xlu0 %v255, 17
      %v317 = vpop.permute.xlu0 %316
      %318 = vrot.lane.b32.xlu0 %v256, 17
      %v319 = vpop.permute.xlu0 %318
      %320 = vrot.lane.b32.xlu0 %v257, 17
      %v321 = vpop.permute.xlu0 %320
      %vm322 = vcmp.lt.s32.totalorder %v271, 17
      %v323 = vsel %vm322, %v319, %v321
      %v324 = vsel %vm322, %v317, %v319
      %v325 = vsel %vm322, %v315, %v317
      %v326 = vsel %vm322, %v313, %v315
      %v327 = vsel %vm322, %v311, %v313
      %v328 = vsel %vm322, %v321, %v311
      %329 = vst [vmem:[#allocation2 + $0x60] sm:$0xff] %v328
      %330 = vst [vmem:[#allocation2 + $0x68] sm:$0xff] %v327
      %331 = vst [vmem:[#allocation2 + $0x70] sm:$0xff] %v326
      %332 = vst [vmem:[#allocation2 + $0x78] sm:$0xff] %v325
      %333 = vst [vmem:[#allocation2 + $0x80] sm:$0xff] %v324
      %334 = vst [vmem:[#allocation2 + $0x88] sm:$0xff] %v323
      %335 = vrot.lane.b32.xlu0 %v252, 1
      %v336 = vpop.permute.xlu0 %335
      %337 = vrot.lane.b32.xlu0 %v253, 1
      %v338 = vpop.permute.xlu0 %337
      %339 = vrot.lane.b32.xlu0 %v254, 1
      %v340 = vpop.permute.xlu0 %339
      %341 = vrot.lane.b32.xlu0 %v255, 1
      %v342 = vpop.permute.xlu0 %341
      %343 = vrot.lane.b32.xlu0 %v256, 1
      %v344 = vpop.permute.xlu0 %343
      %345 = vrot.lane.b32.xlu0 %v257, 1
      %v346 = vpop.permute.xlu0 %345
      %vm347 = vcmp.lt.s32.totalorder %v271, 1
      %v348 = vsel %vm347, %v344, %v346
      %v349 = vsel %vm347, %v342, %v344
      %v350 = vsel %vm347, %v340, %v342
      %v351 = vsel %vm347, %v338, %v340
      %v352 = vsel %vm347, %v336, %v338
      %v353 = vsel %vm347, %v346, %v336
      %354 = vst [vmem:[#allocation2 + $0x90] sm:$0xff] %v353
      %355 = vst [vmem:[#allocation2 + $0x98] sm:$0xff] %v352
      %356 = vst [vmem:[#allocation2 + $0xa0] sm:$0xff] %v351
      %357 = vst [vmem:[#allocation2 + $0xa8] sm:$0xff] %v350
      %358 = vst [vmem:[#allocation2 + $0xb0] sm:$0xff] %v349
      %359 = vst [vmem:[#allocation2 + $0xb8] sm:$0xff] %v348
      %360 = vst [vmem:[#allocation2 + $0xc0] sm:$0xff] %v252
      %361 = vst [vmem:[#allocation2 + $0xc8] sm:$0xff] %v253
      %362 = vst [vmem:[#allocation2 + $0xd0] sm:$0xff] %v254
      %363 = vst [vmem:[#allocation2 + $0xd8] sm:$0xff] %v255
      %364 = vst [vmem:[#allocation2 + $0xe0] sm:$0xff] %v256
      %365 = vst [vmem:[#allocation2 + $0xe8] sm:$0xff] %v257
      %366 = vrot.lane.b32.xlu0 %v252, 127
      %v367 = vpop.permute.xlu0 %366
      %368 = vrot.lane.b32.xlu0 %v253, 127
      %v369 = vpop.permute.xlu0 %368
      %370 = vrot.lane.b32.xlu0 %v254, 127
      %v371 = vpop.permute.xlu0 %370
      %372 = vrot.lane.b32.xlu0 %v255, 127
      %v373 = vpop.permute.xlu0 %372
      %374 = vrot.lane.b32.xlu0 %v256, 127
      %v375 = vpop.permute.xlu0 %374
      %376 = vrot.lane.b32.xlu0 %v257, 127
      %v377 = vpop.permute.xlu0 %376
      %vm378 = vcmp.lt.s32.totalorder %v271, 127
      %v379 = vsel %vm378, %v375, %v377
      %v380 = vsel %vm378, %v373, %v375
      %v381 = vsel %vm378, %v371, %v373
      %v382 = vsel %vm378, %v369, %v371
      %v383 = vsel %vm378, %v367, %v369
      %v384 = vsel %vm378, %v377, %v367
      %385 = vst [vmem:[#allocation2 + $0xf0] sm:$0xff] %v383
      %386 = vst [vmem:[#allocation2 + $0xf8] sm:$0xff] %v382
      %387 = vst [vmem:[#allocation2 + $0x100] sm:$0xff] %v381
      %388 = vst [vmem:[#allocation2 + $0x108] sm:$0xff] %v380
      %389 = vst [vmem:[#allocation2 + $0x110] sm:$0xff] %v379
      %390 = vst [vmem:[#allocation2 + $0x118] sm:$0xff] %v384
      %391 = vrot.lane.b32.xlu0 %v252, 111
      %v392 = vpop.permute.xlu0 %391
      %393 = vrot.lane.b32.xlu0 %v253, 111
      %v394 = vpop.permute.xlu0 %393
      %395 = vrot.lane.b32.xlu0 %v254, 111
      %v396 = vpop.permute.xlu0 %395
      %397 = vrot.lane.b32.xlu0 %v255, 111
      %v398 = vpop.permute.xlu0 %397
      %399 = vrot.lane.b32.xlu0 %v256, 111
      %v400 = vpop.permute.xlu0 %399
      %401 = vrot.lane.b32.xlu0 %v257, 111
      %v402 = vpop.permute.xlu0 %401
      %vm403 = vcmp.lt.s32.totalorder %v271, 111
      %v404 = vsel %vm403, %v400, %v402
      %v405 = vsel %vm403, %v398, %v400
      %v406 = vsel %vm403, %v396, %v398
      %v407 = vsel %vm403, %v394, %v396
      %v408 = vsel %vm403, %v392, %v394
      %v409 = vsel %vm403, %v402, %v392
      %410 = vst [vmem:[#allocation2 + $0x120] sm:$0xff] %v408
      %411 = vst [vmem:[#allocation2 + $0x128] sm:$0xff] %v407
      %412 = vst [vmem:[#allocation2 + $0x130] sm:$0xff] %v406
      %413 = vst [vmem:[#allocation2 + $0x138] sm:$0xff] %v405
      %414 = vst [vmem:[#allocation2 + $0x140] sm:$0xff] %v404
      %415 = vst [vmem:[#allocation2 + $0x148] sm:$0xff] %v409
      %416 = vrot.lane.b32.xlu0 %v252, 110
      %v417 = vpop.permute.xlu0 %416
      %418 = vrot.lane.b32.xlu0 %v253, 110
      %v419 = vpop.permute.xlu0 %418
      %420 = vrot.lane.b32.xlu0 %v254, 110
      %v421 = vpop.permute.xlu0 %420
      %422 = vrot.lane.b32.xlu0 %v255, 110
      %v423 = vpop.permute.xlu0 %422
      %424 = vrot.lane.b32.xlu0 %v256, 110
      %v425 = vpop.permute.xlu0 %424
      %426 = vrot.lane.b32.xlu0 %v257, 110
      %v427 = vpop.permute.xlu0 %426
      %vm428 = vcmp.lt.s32.totalorder %v271, 110
      %v429 = vsel %vm428, %v425, %v427
      %v430 = vsel %vm428, %v423, %v425
      %v431 = vsel %vm428, %v421, %v423
      %v432 = vsel %vm428, %v419, %v421
      %v433 = vsel %vm428, %v417, %v419
      %v434 = vsel %vm428, %v427, %v417
      %435 = vst [vmem:[#allocation2 + $0x150] sm:$0xff] %v433
      %436 = vst [vmem:[#allocation2 + $0x158] sm:$0xff] %v432
      %437 = vst [vmem:[#allocation2 + $0x160] sm:$0xff] %v431
      %438 = vst [vmem:[#allocation2 + $0x168] sm:$0xff] %v430
      %439 = vst [vmem:[#allocation2 + $0x170] sm:$0xff] %v429
      %440 = vst [vmem:[#allocation2 + $0x178] sm:$0xff] %v434
      %441 = vrot.lane.b32.xlu0 %v252, 109
      %v442 = vpop.permute.xlu0 %441
      %443 = vrot.lane.b32.xlu0 %v253, 109
      %v444 = vpop.permute.xlu0 %443
      %445 = vrot.lane.b32.xlu0 %v254, 109
      %v446 = vpop.permute.xlu0 %445
      %447 = vrot.lane.b32.xlu0 %v255, 109
      %v448 = vpop.permute.xlu0 %447
      %449 = vrot.lane.b32.xlu0 %v256, 109
      %v450 = vpop.permute.xlu0 %449
      %451 = vrot.lane.b32.xlu0 %v257, 109
      %v452 = vpop.permute.xlu0 %451
      %vm453 = vcmp.lt.s32.totalorder %v271, 109
      %v454 = vsel %vm453, %v450, %v452
      %v455 = vsel %vm453, %v448, %v450
      %v456 = vsel %vm453, %v446, %v448
      %v457 = vsel %vm453, %v444, %v446
      %v458 = vsel %vm453, %v442, %v444
      %v459 = vsel %vm453, %v452, %v442
      %460 = vst [vmem:[#allocation2 + $0x180] sm:$0xff] %v458
      %461 = vst [vmem:[#allocation2 + $0x188] sm:$0xff] %v457
      %462 = vst [vmem:[#allocation2 + $0x190] sm:$0xff] %v456
      %463 = vst [vmem:[#allocation2 + $0x198] sm:$0xff] %v455
      %464 = vst [vmem:[#allocation2 + $0x1a0] sm:$0xff] %v454
      %465 = vst [vmem:[#allocation2 + $0x1a8] sm:$0xff] %v459
      %v466 = vld [vmem:[%s1] sm:$0xff]
      %v467 = vld [vmem:[#allocation2] sm:$0xff]
      %v468 = vld [vmem:[#allocation2 + $0x8] sm:$0xff]
      %v469 = vld [vmem:[#allocation2 + $0x10] sm:$0xff]
      %v470 = vld [vmem:[#allocation2 + $0x18] sm:$0xff]
      %v471 = vld [vmem:[#allocation2 + $0x20] sm:$0xff]
      %v472 = vld [vmem:[#allocation2 + $0x28] sm:$0xff]
      %v473 = vld [vmem:[#allocation2 + $0x30] sm:$0xff]
      %v474 = vld [vmem:[#allocation2 + $0x38] sm:$0xff]
      %v475 = vld [vmem:[#allocation2 + $0x40] sm:$0xff]
      %v476 = vld [vmem:[#allocation2 + $0x48] sm:$0xff]
      %v477 = vld [vmem:[#allocation2 + $0x50] sm:$0xff]
      %v478 = vld [vmem:[#allocation2 + $0x58] sm:$0xff]
      %v479 = vld [vmem:[#allocation2 + $0x60] sm:$0xff]
      %v480 = vld [vmem:[#allocation2 + $0x68] sm:$0xff]
      %v481 = vld [vmem:[#allocation2 + $0x70] sm:$0xff]
      %v482 = vld [vmem:[#allocation2 + $0x78] sm:$0xff]
      %v483 = vld [vmem:[#allocation2 + $0x80] sm:$0xff]
      %v484 = vld [vmem:[#allocation2 + $0x88] sm:$0xff]
      %v485 = vld [vmem:[#allocation2 + $0x90] sm:$0xff]
      %v486 = vld [vmem:[#allocation2 + $0x98] sm:$0xff]
      %v487 = vld [vmem:[#allocation2 + $0xa0] sm:$0xff]
      %v488 = vld [vmem:[#allocation2 + $0xa8] sm:$0xff]
      %v489 = vld [vmem:[#allocation2 + $0xb0] sm:$0xff]
      %v490 = vld [vmem:[#allocation2 + $0xb8] sm:$0xff]
      %v491 = vld [vmem:[#allocation2 + $0xc0] sm:$0xff]
      %v492 = vld [vmem:[#allocation2 + $0xc8] sm:$0xff]
      %v493 = vld [vmem:[#allocation2 + $0xd0] sm:$0xff]
      %v494 = vld [vmem:[#allocation2 + $0xd8] sm:$0xff]
      %v495 = vld [vmem:[#allocation2 + $0xe0] sm:$0xff]
      %v496 = vld [vmem:[#allocation2 + $0xe8] sm:$0xff]
      %v497 = vld [vmem:[#allocation2 + $0xf0] sm:$0xff]
      %v498 = vld [vmem:[#allocation2 + $0xf8] sm:$0xff]
      %v499 = vld [vmem:[#allocation2 + $0x100] sm:$0xff]
      %v500 = vld [vmem:[#allocation2 + $0x108] sm:$0xff]
      %v501 = vld [vmem:[#allocation2 + $0x110] sm:$0xff]
      %v502 = vld [vmem:[#allocation2 + $0x118] sm:$0xff]
      %v503 = vld [vmem:[#allocation2 + $0x120] sm:$0xff]
      %v504 = vld [vmem:[#allocation2 + $0x128] sm:$0xff]
      %v505 = vld [vmem:[#allocation2 + $0x130] sm:$0xff]
      %v506 = vld [vmem:[#allocation2 + $0x138] sm:$0xff]
      %v507 = vld [vmem:[#allocation2 + $0x140] sm:$0xff]
      %v508 = vld [vmem:[#allocation2 + $0x148] sm:$0xff]
      %v509 = vld [vmem:[#allocation2 + $0x150] sm:$0xff]
      %v510 = vld [vmem:[#allocation2 + $0x158] sm:$0xff]
      %v511 = vld [vmem:[#allocation2 + $0x160] sm:$0xff]
      %v512 = vld [vmem:[#allocation2 + $0x168] sm:$0xff]
      %v513 = vld [vmem:[#allocation2 + $0x170] sm:$0xff]
      %v514 = vld [vmem:[#allocation2 + $0x178] sm:$0xff]
      %v515 = vld [vmem:[#allocation2 + $0x180] sm:$0xff]
      %v516 = vld [vmem:[#allocation2 + $0x188] sm:$0xff]
      %v517 = vld [vmem:[#allocation2 + $0x190] sm:$0xff]
      %v518 = vld [vmem:[#allocation2 + $0x198] sm:$0xff]
      %v519 = vld [vmem:[#allocation2 + $0x1a0] sm:$0xff]
      %v520 = vld [vmem:[#allocation2 + $0x1a8] sm:$0xff]
      %v521 = vld [vmem:[%s2] sm:$0xff]
      %523 = vset.pattern.permute.xlu0 0
      %524 = vperm.xlu0 %523, %v521
      %v525 = vpop.permute.xlu0 %524
      %vm527 = vcmask 588800
      %v529 = vsel %vm527, %v466, 0
      %531 = vmatprep.subr.mxu0 %v468
      %532 = vmatpush1.msra.mxu0 %v467
      %533 = vmatprep.subr.mxu0 %v474
      %534 = vmatpush1.msra.mxu0 %v473
      %535 = vmatprep.subr.mxu0 %v480
      %536 = vmatpush1.msra.mxu0 %v479
      %537 = vmatprep.subr.mxu0 %v486
      %538 = vmatpush1.msra.mxu0 %v485
      %539 = vmatprep.subr.mxu0 %v492
      %540 = vmatpush1.msra.mxu0 %v491
      %541 = vmatprep.subr.mxu0 %v498
      %542 = vmatpush1.msra.mxu0 %v497
      %543 = vmatprep.subr.mxu0 %v504
      %544 = vmatpush1.msra.mxu0 %v503
      %545 = vmatprep.subr.mxu0 %v510
      %546 = vmatpush1.msra.mxu0 %v509
      %547 = vmatprep.subr.mxu0 %v516
      %548 = vmatpush1.msra.mxu0 %v515
      %549 = vmatprep.subr.mxu0 0.0
      %550 = vmatpush1.msra.mxu0 0.0
      %551 = vmatprep.subr.mxu0 0.0
      %552 = vmatpush1.msra.mxu0 0.0
      %553 = vmatprep.subr.mxu0 0.0
      %554 = vmatpush1.msra.mxu0 0.0
      %555 = vmatprep.subr.mxu0 0.0
      %556 = vmatpush1.msra.mxu0 0.0
      %557 = vmatprep.subr.mxu0 0.0
      %558 = vmatpush1.msra.mxu0 0.0
      %559 = vmatprep.subr.mxu0 0.0
      %560 = vmatpush1.msra.mxu0 0.0
      %561 = vmatprep.subr.mxu0 0.0
      %562 = vmatpush1.msra.mxu0 0.0
      %563 = vmatprep.subr.mxu0 0.0
      %564 = vmatpush1.msra.mxu0 0.0
      %565 = vmatprep.subr.mxu0 0.0
      %566 = vmatpush1.msra.mxu0 0.0
      %567 = vmatprep.subr.mxu0 0.0
      %568 = vmatpush1.msra.mxu0 0.0
      %569 = vmatprep.subr.mxu0 0.0
      %570 = vmatpush1.msra.mxu0 0.0
      %571 = vmatprep.subr.mxu0 0.0
      %572 = vmatpush1.msra.mxu0 0.0
      %573 = vmatprep.subr.mxu0 0.0
      %574 = vmatpush1.msra.mxu0 0.0
      %575 = vmatprep.subr.mxu0 0.0
      %576 = vmatpush1.msra.mxu0 0.0
      %577 = vmatprep.subr.mxu0 0.0
      %578 = vmatpush1.msra.mxu0 0.0
      %579 = vmatprep.subr.mxu0 0.0
      %580 = vmatpush1.msra.mxu0 0.0
      %581 = vmatprep.subr.mxu0 0.0
      %582 = vmatpush1.msra.mxu0 0.0
      %583 = vmatprep.subr.mxu0 0.0
      %584 = vmatpush1.msra.mxu0 0.0
      %585 = vmatprep.subr.mxu0 0.0
      %586 = vmatpush1.msra.mxu0 0.0
      %587 = vmatprep.subr.mxu0 0.0
      %588 = vmatpush1.msra.mxu0 0.0
      %589 = vmatprep.subr.mxu0 0.0
      %590 = vmatpush1.msra.mxu0 0.0
      %591 = vmatprep.subr.mxu0 0.0
      %592 = vmatpush1.msra.mxu0 0.0
      %593 = vmatprep.subr.mxu0 0.0
      %594 = vmatpush1.msra.mxu0 0.0
      %595 = vmatprep.mubr.f32.mxu0 0.0
      %596 = vmatmul.mubr.f32.gmra.mrb[0].mxu0 %v529
      %v597 = vpop.f32.mrb[0].mxu0
      %v598 = vadd.f32 %v525, %v597
      %v599 = vpop.f32.mrb[0].mxu0
      %v600 = vadd.f32 %v525, %v599
      %601 = vdwg.mxu0
      %602 = vmatprep.subr.mxu0 %v470
      %603 = vmatpush1.msra.mxu0 %v469
      %604 = vmatprep.subr.mxu0 %v476
      %605 = vmatpush1.msra.mxu0 %v475
      %606 = vmatprep.subr.mxu0 %v482
      %607 = vmatpush1.msra.mxu0 %v481
      %608 = vmatprep.subr.mxu0 %v488
      %609 = vmatpush1.msra.mxu0 %v487
      %610 = vmatprep.subr.mxu0 %v494
      %611 = vmatpush1.msra.mxu0 %v493
      %612 = vmatprep.subr.mxu0 %v500
      %613 = vmatpush1.msra.mxu0 %v499
      %614 = vmatprep.subr.mxu0 %v506
      %615 = vmatpush1.msra.mxu0 %v505
      %616 = vmatprep.subr.mxu0 %v512
      %617 = vmatpush1.msra.mxu0 %v511
      %618 = vmatprep.subr.mxu0 %v518
      %619 = vmatpush1.msra.mxu0 %v517
      %620 = vmatprep.subr.mxu0 0.0
      %621 = vmatpush1.msra.mxu0 0.0
      %622 = vmatprep.subr.mxu0 0.0
      %623 = vmatpush1.msra.mxu0 0.0
      %624 = vmatprep.subr.mxu0 0.0
      %625 = vmatpush1.msra.mxu0 0.0
      %626 = vmatprep.subr.mxu0 0.0
      %627 = vmatpush1.msra.mxu0 0.0
      %628 = vmatprep.subr.mxu0 0.0
      %629 = vmatpush1.msra.mxu0 0.0
      %630 = vmatprep.subr.mxu0 0.0
      %631 = vmatpush1.msra.mxu0 0.0
      %632 = vmatprep.subr.mxu0 0.0
      %633 = vmatpush1.msra.mxu0 0.0
      %634 = vmatprep.subr.mxu0 0.0
      %635 = vmatpush1.msra.mxu0 0.0
      %636 = vmatprep.subr.mxu0 0.0
      %637 = vmatpush1.msra.mxu0 0.0
      %638 = vmatprep.subr.mxu0 0.0
      %639 = vmatpush1.msra.mxu0 0.0
      %640 = vmatprep.subr.mxu0 0.0
      %641 = vmatpush1.msra.mxu0 0.0
      %642 = vmatprep.subr.mxu0 0.0
      %643 = vmatpush1.msra.mxu0 0.0
      %644 = vmatprep.subr.mxu0 0.0
      %645 = vmatpush1.msra.mxu0 0.0
      %646 = vmatprep.subr.mxu0 0.0
      %647 = vmatpush1.msra.mxu0 0.0
      %648 = vmatprep.subr.mxu0 0.0
      %649 = vmatpush1.msra.mxu0 0.0
      %650 = vmatprep.subr.mxu0 0.0
      %651 = vmatpush1.msra.mxu0 0.0
      %652 = vmatprep.subr.mxu0 0.0
      %653 = vmatpush1.msra.mxu0 0.0
      %654 = vmatprep.subr.mxu0 0.0
      %655 = vmatpush1.msra.mxu0 0.0
      %656 = vmatprep.subr.mxu0 0.0
      %657 = vmatpush1.msra.mxu0 0.0
      %658 = vmatprep.subr.mxu0 0.0
      %659 = vmatpush1.msra.mxu0 0.0
      %660 = vmatprep.subr.mxu0 0.0
      %661 = vmatpush1.msra.mxu0 0.0
      %662 = vmatprep.subr.mxu0 0.0
      %663 = vmatpush1.msra.mxu0 0.0
      %664 = vmatprep.subr.mxu0 0.0
      %665 = vmatpush1.msra.mxu0 0.0
      %666 = vmatprep.mubr.f32.mxu0 0.0
      %667 = vmatmul.mubr.f32.gmra.mrb[0].mxu0 %v529
      %v668 = vpop.f32.mrb[0].mxu0
      %v669 = vadd.f32 %v525, %v668
      %v670 = vpop.f32.mrb[0].mxu0
      %v671 = vadd.f32 %v525, %v670
      %672 = vdwg.mxu0
      %673 = vmatprep.subr.mxu0 %v472
      %674 = vmatpush1.msra.mxu0 %v471
      %675 = vmatprep.subr.mxu0 %v478
      %676 = vmatpush1.msra.mxu0 %v477
      %677 = vmatprep.subr.mxu0 %v484
      %678 = vmatpush1.msra.mxu0 %v483
      %679 = vmatprep.subr.mxu0 %v490
      %680 = vmatpush1.msra.mxu0 %v489
      %681 = vmatprep.subr.mxu0 %v496
      %682 = vmatpush1.msra.mxu0 %v495
      %683 = vmatprep.subr.mxu0 %v502
      %684 = vmatpush1.msra.mxu0 %v501
      %685 = vmatprep.subr.mxu0 %v508
      %686 = vmatpush1.msra.mxu0 %v507
      %687 = vmatprep.subr.mxu0 %v514
      %688 = vmatpush1.msra.mxu0 %v513
      %689 = vmatprep.subr.mxu0 %v520
      %690 = vmatpush1.msra.mxu0 %v519
      %691 = vmatprep.subr.mxu0 0.0
      %692 = vmatpush1.msra.mxu0 0.0
      %693 = vmatprep.subr.mxu0 0.0
      %694 = vmatpush1.msra.mxu0 0.0
      %695 = vmatprep.subr.mxu0 0.0
      %696 = vmatpush1.msra.mxu0 0.0
      %697 = vmatprep.subr.mxu0 0.0
      %698 = vmatpush1.msra.mxu0 0.0
      %699 = vmatprep.subr.mxu0 0.0
      %700 = vmatpush1.msra.mxu0 0.0
      %701 = vmatprep.subr.mxu0 0.0
      %702 = vmatpush1.msra.mxu0 0.0
      %703 = vmatprep.subr.mxu0 0.0
      %704 = vmatpush1.msra.mxu0 0.0
      %705 = vmatprep.subr.mxu0 0.0
      %706 = vmatpush1.msra.mxu0 0.0
      %707 = vmatprep.subr.mxu0 0.0
      %708 = vmatpush1.msra.mxu0 0.0
      %709 = vmatprep.subr.mxu0 0.0
      %710 = vmatpush1.msra.mxu0 0.0
      %711 = vmatprep.subr.mxu0 0.0
      %712 = vmatpush1.msra.mxu0 0.0
      %713 = vmatprep.subr.mxu0 0.0
      %714 = vmatpush1.msra.mxu0 0.0
      %715 = vmatprep.subr.mxu0 0.0
      %716 = vmatpush1.msra.mxu0 0.0
      %717 = vmatprep.subr.mxu0 0.0
      %718 = vmatpush1.msra.mxu0 0.0
      %719 = vmatprep.subr.mxu0 0.0
      %720 = vmatpush1.msra.mxu0 0.0
      %721 = vmatprep.subr.mxu0 0.0
      %722 = vmatpush1.msra.mxu0 0.0
      %723 = vmatprep.subr.mxu0 0.0
      %724 = vmatpush1.msra.mxu0 0.0
      %725 = vmatprep.subr.mxu0 0.0
      %726 = vmatpush1.msra.mxu0 0.0
      %727 = vmatprep.subr.mxu0 0.0
      %728 = vmatpush1.msra.mxu0 0.0
      %729 = vmatprep.subr.mxu0 0.0
      %730 = vmatpush1.msra.mxu0 0.0
      %731 = vmatprep.subr.mxu0 0.0
      %732 = vmatpush1.msra.mxu0 0.0
      %733 = vmatprep.subr.mxu0 0.0
      %734 = vmatpush1.msra.mxu0 0.0
      %735 = vmatprep.subr.mxu0 0.0
      %736 = vmatpush1.msra.mxu0 0.0
      %737 = vmatprep.mubr.f32.mxu0 0.0
      %738 = vmatmul.mubr.f32.gmra.mrb[0].mxu0 %v529
      %v739 = vpop.f32.mrb[0].mxu0
      %v740 = vadd.f32 %v525, %v739
      %v741 = vpop.f32.mrb[0].mxu0
      %v742 = vadd.f32 %v525, %v741
      %743 = vdwg.mxu0
      %v744 = vmax.f32 %v598, 0.0
      %v745 = vmax.f32 %v600, 0.0
      %v746 = vmax.f32 %v669, 0.0
      %v747 = vmax.f32 %v671, 0.0
      %v748 = vmax.f32 %v740, 0.0
      %v749 = vmax.f32 %v742, 0.0
      %v750 = vld [vmem:[%s5] sm:$0x3f]
      %v752 = vlaneseq
      %v753 = vshrl.u32 %v752, 7
      %v754 = vsub.s32 0, %v753
      %v755 = vrot.slane %v750, %v754
      %v756 = vlaneseq
      %v757 = vshrl.u32 %v756, 7
      %v758 = vsub.s32 1, %v757
      %v759 = vrot.slane %v750, %v758
      %v760 = vlaneseq
      %v761 = vshrl.u32 %v760, 7
      %v762 = vsub.s32 2, %v761
      %v763 = vrot.slane %v750, %v762
      %v764 = vlaneseq
      %v765 = vshrl.u32 %v764, 7
      %v766 = vsub.s32 3, %v765
      %v767 = vrot.slane %v750, %v766
      %v768 = vlaneseq
      %v769 = vshrl.u32 %v768, 7
      %v770 = vsub.s32 4, %v769
      %v771 = vrot.slane %v750, %v770
      %v772 = vlaneseq
      %v773 = vshrl.u32 %v772, 7
      %v774 = vsub.s32 5, %v773
      %v775 = vrot.slane %v750, %v774
      %v782 = vmul.f32 %v744, %v755
      %v783 = vmul.f32 %v745, %v759
      %v784 = vmul.f32 %v746, %v763
      %v785 = vmul.f32 %v747, %v767
      %v786 = vmul.f32 %v748, %v771
      %v787 = vmul.f32 %v749, %v775
      %788 = vrot.lane.b32.xlu0 %v782, 19
      %v789 = vpop.permute.xlu0 %788
      %790 = vrot.lane.b32.xlu0 %v783, 19
      %v791 = vpop.permute.xlu0 %790
      %792 = vrot.lane.b32.xlu0 %v784, 19
      %v793 = vpop.permute.xlu0 %792
      %794 = vrot.lane.b32.xlu0 %v785, 19
      %v795 = vpop.permute.xlu0 %794
      %796 = vrot.lane.b32.xlu0 %v786, 19
      %v797 = vpop.permute.xlu0 %796
      %798 = vrot.lane.b32.xlu0 %v787, 19
      %v799 = vpop.permute.xlu0 %798
      %v800 = vsel %vm272, %v797, %v799
      %v801 = vsel %vm272, %v795, %v797
      %v802 = vsel %vm272, %v793, %v795
      %v803 = vsel %vm272, %v791, %v793
      %v804 = vsel %vm272, %v789, %v791
      %v805 = vsel %vm272, %v799, %v789
      %806 = vst [vmem:[#allocation2] sm:$0xff] %v805
      %807 = vst [vmem:[#allocation2 + $0x8] sm:$0xff] %v804
      %808 = vst [vmem:[#allocation2 + $0x10] sm:$0xff] %v803
      %809 = vst [vmem:[#allocation2 + $0x18] sm:$0xff] %v802
      %810 = vst [vmem:[#allocation2 + $0x20] sm:$0xff] %v801
      %811 = vst [vmem:[#allocation2 + $0x28] sm:$0xff] %v800
      %812 = vrot.lane.b32.xlu0 %v782, 18
      %v813 = vpop.permute.xlu0 %812
      %814 = vrot.lane.b32.xlu0 %v783, 18
      %v815 = vpop.permute.xlu0 %814
      %816 = vrot.lane.b32.xlu0 %v784, 18
      %v817 = vpop.permute.xlu0 %816
      %818 = vrot.lane.b32.xlu0 %v785, 18
      %v819 = vpop.permute.xlu0 %818
      %820 = vrot.lane.b32.xlu0 %v786, 18
      %v821 = vpop.permute.xlu0 %820
      %822 = vrot.lane.b32.xlu0 %v787, 18
      %v823 = vpop.permute.xlu0 %822
      %v824 = vsel %vm297, %v821, %v823
      %v825 = vsel %vm297, %v819, %v821
      %v826 = vsel %vm297, %v817, %v819
      %v827 = vsel %vm297, %v815, %v817
      %v828 = vsel %vm297, %v813, %v815
      %v829 = vsel %vm297, %v823, %v813
      %830 = vst [vmem:[#allocation2 + $0x30] sm:$0xff] %v829
      %831 = vst [vmem:[#allocation2 + $0x38] sm:$0xff] %v828
      %832 = vst [vmem:[#allocation2 + $0x40] sm:$0xff] %v827
      %833 = vst [vmem:[#allocation2 + $0x48] sm:$0xff] %v826
      %834 = vst [vmem:[#allocation2 + $0x50] sm:$0xff] %v825
      %835 = vst [vmem:[#allocation2 + $0x58] sm:$0xff] %v824
      %836 = vrot.lane.b32.xlu0 %v782, 17
      %v837 = vpop.permute.xlu0 %836
      %838 = vrot.lane.b32.xlu0 %v783, 17
      %v839 = vpop.permute.xlu0 %838
      %840 = vrot.lane.b32.xlu0 %v784, 17
      %v841 = vpop.permute.xlu0 %840
      %842 = vrot.lane.b32.xlu0 %v785, 17
      %v843 = vpop.permute.xlu0 %842
      %844 = vrot.lane.b32.xlu0 %v786, 17
      %v845 = vpop.permute.xlu0 %844
      %846 = vrot.lane.b32.xlu0 %v787, 17
      %v847 = vpop.permute.xlu0 %846
      %v848 = vsel %vm322, %v845, %v847
      %v849 = vsel %vm322, %v843, %v845
      %v850 = vsel %vm322, %v841, %v843
      %v851 = vsel %vm322, %v839, %v841
      %v852 = vsel %vm322, %v837, %v839
      %v853 = vsel %vm322, %v847, %v837
      %854 = vst [vmem:[#allocation2 + $0x60] sm:$0xff] %v853
      %855 = vst [vmem:[#allocation2 + $0x68] sm:$0xff] %v852
      %856 = vst [vmem:[#allocation2 + $0x70] sm:$0xff] %v851
      %857 = vst [vmem:[#allocation2 + $0x78] sm:$0xff] %v850
      %858 = vst [vmem:[#allocation2 + $0x80] sm:$0xff] %v849
      %859 = vst [vmem:[#allocation2 + $0x88] sm:$0xff] %v848
      %860 = vrot.lane.b32.xlu0 %v782, 1
      %v861 = vpop.permute.xlu0 %860
      %862 = vrot.lane.b32.xlu0 %v783, 1
      %v863 = vpop.permute.xlu0 %862
      %864 = vrot.lane.b32.xlu0 %v784, 1
      %v865 = vpop.permute.xlu0 %864
      %866 = vrot.lane.b32.xlu0 %v785, 1
      %v867 = vpop.permute.xlu0 %866
      %868 = vrot.lane.b32.xlu0 %v786, 1
      %v869 = vpop.permute.xlu0 %868
      %870 = vrot.lane.b32.xlu0 %v787, 1
      %v871 = vpop.permute.xlu0 %870
      %v872 = vsel %vm347, %v869, %v871
      %v873 = vsel %vm347, %v867, %v869
      %v874 = vsel %vm347, %v865, %v867
      %v875 = vsel %vm347, %v863, %v865
      %v876 = vsel %vm347, %v861, %v863
      %v877 = vsel %vm347, %v871, %v861
      %878 = vst [vmem:[#allocation2 + $0x90] sm:$0xff] %v877
      %879 = vst [vmem:[#allocation2 + $0x98] sm:$0xff] %v876
      %880 = vst [vmem:[#allocation2 + $0xa0] sm:$0xff] %v875
      %881 = vst [vmem:[#allocation2 + $0xa8] sm:$0xff] %v874
      %882 = vst [vmem:[#allocation2 + $0xb0] sm:$0xff] %v873
      %883 = vst [vmem:[#allocation2 + $0xb8] sm:$0xff] %v872
      %884 = vst [vmem:[#allocation2 + $0xc0] sm:$0xff] %v782
      %885 = vst [vmem:[#allocation2 + $0xc8] sm:$0xff] %v783
      %886 = vst [vmem:[#allocation2 + $0xd0] sm:$0xff] %v784
      %887 = vst [vmem:[#allocation2 + $0xd8] sm:$0xff] %v785
      %888 = vst [vmem:[#allocation2 + $0xe0] sm:$0xff] %v786
      %889 = vst [vmem:[#allocation2 + $0xe8] sm:$0xff] %v787
      %890 = vrot.lane.b32.xlu0 %v782, 127
      %v891 = vpop.permute.xlu0 %890
      %892 = vrot.lane.b32.xlu0 %v783, 127
      %v893 = vpop.permute.xlu0 %892
      %894 = vrot.lane.b32.xlu0 %v784, 127
      %v895 = vpop.permute.xlu0 %894
      %896 = vrot.lane.b32.xlu0 %v785, 127
      %v897 = vpop.permute.xlu0 %896
      %898 = vrot.lane.b32.xlu0 %v786, 127
      %v899 = vpop.permute.xlu0 %898
      %900 = vrot.lane.b32.xlu0 %v787, 127
      %v901 = vpop.permute.xlu0 %900
      %v902 = vsel %vm378, %v899, %v901
      %v903 = vsel %vm378, %v897, %v899
      %v904 = vsel %vm378, %v895, %v897
      %v905 = vsel %vm378, %v893, %v895
      %v906 = vsel %vm378, %v891, %v893
      %v907 = vsel %vm378, %v901, %v891
      %908 = vst [vmem:[#allocation2 + $0xf0] sm:$0xff] %v906
      %909 = vst [vmem:[#allocation2 + $0xf8] sm:$0xff] %v905
      %910 = vst [vmem:[#allocation2 + $0x100] sm:$0xff] %v904
      %911 = vst [vmem:[#allocation2 + $0x108] sm:$0xff] %v903
      %912 = vst [vmem:[#allocation2 + $0x110] sm:$0xff] %v902
      %913 = vst [vmem:[#allocation2 + $0x118] sm:$0xff] %v907
      %914 = vrot.lane.b32.xlu0 %v782, 111
      %v915 = vpop.permute.xlu0 %914
      %916 = vrot.lane.b32.xlu0 %v783, 111
      %v917 = vpop.permute.xlu0 %916
      %918 = vrot.lane.b32.xlu0 %v784, 111
      %v919 = vpop.permute.xlu0 %918
      %920 = vrot.lane.b32.xlu0 %v785, 111
      %v921 = vpop.permute.xlu0 %920
      %922 = vrot.lane.b32.xlu0 %v786, 111
      %v923 = vpop.permute.xlu0 %922
      %924 = vrot.lane.b32.xlu0 %v787, 111
      %v925 = vpop.permute.xlu0 %924
      %v926 = vsel %vm403, %v923, %v925
      %v927 = vsel %vm403, %v921, %v923
      %v928 = vsel %vm403, %v919, %v921
      %v929 = vsel %vm403, %v917, %v919
      %v930 = vsel %vm403, %v915, %v917
      %v931 = vsel %vm403, %v925, %v915
      %932 = vst [vmem:[#allocation2 + $0x120] sm:$0xff] %v930
      %933 = vst [vmem:[#allocation2 + $0x128] sm:$0xff] %v929
      %934 = vst [vmem:[#allocation2 + $0x130] sm:$0xff] %v928
      %935 = vst [vmem:[#allocation2 + $0x138] sm:$0xff] %v927
      %936 = vst [vmem:[#allocation2 + $0x140] sm:$0xff] %v926
      %937 = vst [vmem:[#allocation2 + $0x148] sm:$0xff] %v931
      %938 = vrot.lane.b32.xlu0 %v782, 110
      %v939 = vpop.permute.xlu0 %938
      %940 = vrot.lane.b32.xlu0 %v783, 110
      %v941 = vpop.permute.xlu0 %940
      %942 = vrot.lane.b32.xlu0 %v784, 110
      %v943 = vpop.permute.xlu0 %942
      %944 = vrot.lane.b32.xlu0 %v785, 110
      %v945 = vpop.permute.xlu0 %944
      %946 = vrot.lane.b32.xlu0 %v786, 110
      %v947 = vpop.permute.xlu0 %946
      %948 = vrot.lane.b32.xlu0 %v787, 110
      %v949 = vpop.permute.xlu0 %948
      %v950 = vsel %vm428, %v947, %v949
      %v951 = vsel %vm428, %v945, %v947
      %v952 = vsel %vm428, %v943, %v945
      %v953 = vsel %vm428, %v941, %v943
      %v954 = vsel %vm428, %v939, %v941
      %v955 = vsel %vm428, %v949, %v939
      %956 = vst [vmem:[#allocation2 + $0x150] sm:$0xff] %v954
      %957 = vst [vmem:[#allocation2 + $0x158] sm:$0xff] %v953
      %958 = vst [vmem:[#allocation2 + $0x160] sm:$0xff] %v952
      %959 = vst [vmem:[#allocation2 + $0x168] sm:$0xff] %v951
      %960 = vst [vmem:[#allocation2 + $0x170] sm:$0xff] %v950
      %961 = vst [vmem:[#allocation2 + $0x178] sm:$0xff] %v955
      %962 = vrot.lane.b32.xlu0 %v782, 109
      %v963 = vpop.permute.xlu0 %962
      %964 = vrot.lane.b32.xlu0 %v783, 109
      %v965 = vpop.permute.xlu0 %964
      %966 = vrot.lane.b32.xlu0 %v784, 109
      %v967 = vpop.permute.xlu0 %966
      %968 = vrot.lane.b32.xlu0 %v785, 109
      %v969 = vpop.permute.xlu0 %968
      %970 = vrot.lane.b32.xlu0 %v786, 109
      %v971 = vpop.permute.xlu0 %970
      %972 = vrot.lane.b32.xlu0 %v787, 109
      %v973 = vpop.permute.xlu0 %972
      %v974 = vsel %vm453, %v971, %v973
      %v975 = vsel %vm453, %v969, %v971
      %v976 = vsel %vm453, %v967, %v969
      %v977 = vsel %vm453, %v965, %v967
      %v978 = vsel %vm453, %v963, %v965
      %v979 = vsel %vm453, %v973, %v963
      %980 = vst [vmem:[#allocation2 + $0x180] sm:$0xff] %v978
      %981 = vst [vmem:[#allocation2 + $0x188] sm:$0xff] %v977
      %982 = vst [vmem:[#allocation2 + $0x190] sm:$0xff] %v976
      %983 = vst [vmem:[#allocation2 + $0x198] sm:$0xff] %v975
      %984 = vst [vmem:[#allocation2 + $0x1a0] sm:$0xff] %v974
      %985 = vst [vmem:[#allocation2 + $0x1a8] sm:$0xff] %v979
      %v986 = vld [vmem:[%s3] sm:$0xff]
      %v987 = vld [vmem:[#allocation2] sm:$0xff]
      %v988 = vld [vmem:[#allocation2 + $0x8] sm:$0xff]
      %v989 = vld [vmem:[#allocation2 + $0x10] sm:$0xff]
      %v990 = vld [vmem:[#allocation2 + $0x18] sm:$0xff]
      %v991 = vld [vmem:[#allocation2 + $0x20] sm:$0xff]
      %v992 = vld [vmem:[#allocation2 + $0x28] sm:$0xff]
      %v993 = vld [vmem:[#allocation2 + $0x30] sm:$0xff]
      %v994 = vld [vmem:[#allocation2 + $0x38] sm:$0xff]
      %v995 = vld [vmem:[#allocation2 + $0x40] sm:$0xff]
      %v996 = vld [vmem:[#allocation2 + $0x48] sm:$0xff]
      %v997 = vld [vmem:[#allocation2 + $0x50] sm:$0xff]
      %v998 = vld [vmem:[#allocation2 + $0x58] sm:$0xff]
      %v999 = vld [vmem:[#allocation2 + $0x60] sm:$0xff]
      %v1000 = vld [vmem:[#allocation2 + $0x68] sm:$0xff]
      %v1001 = vld [vmem:[#allocation2 + $0x70] sm:$0xff]
      %v1002 = vld [vmem:[#allocation2 + $0x78] sm:$0xff]
      %v1003 = vld [vmem:[#allocation2 + $0x80] sm:$0xff]
      %v1004 = vld [vmem:[#allocation2 + $0x88] sm:$0xff]
      %v1005 = vld [vmem:[#allocation2 + $0x90] sm:$0xff]
      %v1006 = vld [vmem:[#allocation2 + $0x98] sm:$0xff]
      %v1007 = vld [vmem:[#allocation2 + $0xa0] sm:$0xff]
      %v1008 = vld [vmem:[#allocation2 + $0xa8] sm:$0xff]
      %v1009 = vld [vmem:[#allocation2 + $0xb0] sm:$0xff]
      %v1010 = vld [vmem:[#allocation2 + $0xb8] sm:$0xff]
      %v1011 = vld [vmem:[#allocation2 + $0xc0] sm:$0xff]
      %v1012 = vld [vmem:[#allocation2 + $0xc8] sm:$0xff]
      %v1013 = vld [vmem:[#allocation2 + $0xd0] sm:$0xff]
      %v1014 = vld [vmem:[#allocation2 + $0xd8] sm:$0xff]
      %v1015 = vld [vmem:[#allocation2 + $0xe0] sm:$0xff]
      %v1016 = vld [vmem:[#allocation2 + $0xe8] sm:$0xff]
      %v1017 = vld [vmem:[#allocation2 + $0xf0] sm:$0xff]
      %v1018 = vld [vmem:[#allocation2 + $0xf8] sm:$0xff]
      %v1019 = vld [vmem:[#allocation2 + $0x100] sm:$0xff]
      %v1020 = vld [vmem:[#allocation2 + $0x108] sm:$0xff]
      %v1021 = vld [vmem:[#allocation2 + $0x110] sm:$0xff]
      %v1022 = vld [vmem:[#allocation2 + $0x118] sm:$0xff]
      %v1023 = vld [vmem:[#allocation2 + $0x120] sm:$0xff]
      %v1024 = vld [vmem:[#allocation2 + $0x128] sm:$0xff]
      %v1025 = vld [vmem:[#allocation2 + $0x130] sm:$0xff]
      %v1026 = vld [vmem:[#allocation2 + $0x138] sm:$0xff]
      %v1027 = vld [vmem:[#allocation2 + $0x140] sm:$0xff]
      %v1028 = vld [vmem:[#allocation2 + $0x148] sm:$0xff]
      %v1029 = vld [vmem:[#allocation2 + $0x150] sm:$0xff]
      %v1030 = vld [vmem:[#allocation2 + $0x158] sm:$0xff]
      %v1031 = vld [vmem:[#allocation2 + $0x160] sm:$0xff]
      %v1032 = vld [vmem:[#allocation2 + $0x168] sm:$0xff]
      %v1033 = vld [vmem:[#allocation2 + $0x170] sm:$0xff]
      %v1034 = vld [vmem:[#allocation2 + $0x178] sm:$0xff]
      %v1035 = vld [vmem:[#allocation2 + $0x180] sm:$0xff]
      %v1036 = vld [vmem:[#allocation2 + $0x188] sm:$0xff]
      %v1037 = vld [vmem:[#allocation2 + $0x190] sm:$0xff]
      %v1038 = vld [vmem:[#allocation2 + $0x198] sm:$0xff]
      %v1039 = vld [vmem:[#allocation2 + $0x1a0] sm:$0xff]
      %v1040 = vld [vmem:[#allocation2 + $0x1a8] sm:$0xff]
      %v1041 = vld [vmem:[%s4] sm:$0xff]
      %1043 = vset.pattern.permute.xlu0 0
      %1044 = vperm.xlu0 %1043, %v1041
      %v1045 = vpop.permute.xlu0 %1044
      %v1048 = vsel %vm527, %v986, 0
      %1050 = vmatprep.subr.mxu0 %v988
      %1051 = vmatpush1.msra.mxu0 %v987
      %1052 = vmatprep.subr.mxu0 %v994
      %1053 = vmatpush1.msra.mxu0 %v993
      %1054 = vmatprep.subr.mxu0 %v1000
      %1055 = vmatpush1.msra.mxu0 %v999
      %1056 = vmatprep.subr.mxu0 %v1006
      %1057 = vmatpush1.msra.mxu0 %v1005
      %1058 = vmatprep.subr.mxu0 %v1012
      %1059 = vmatpush1.msra.mxu0 %v1011
      %1060 = vmatprep.subr.mxu0 %v1018
      %1061 = vmatpush1.msra.mxu0 %v1017
      %1062 = vmatprep.subr.mxu0 %v1024
      %1063 = vmatpush1.msra.mxu0 %v1023
      %1064 = vmatprep.subr.mxu0 %v1030
      %1065 = vmatpush1.msra.mxu0 %v1029
      %1066 = vmatprep.subr.mxu0 %v1036
      %1067 = vmatpush1.msra.mxu0 %v1035
      %1068 = vmatprep.subr.mxu0 0.0
      %1069 = vmatpush1.msra.mxu0 0.0
      %1070 = vmatprep.subr.mxu0 0.0
      %1071 = vmatpush1.msra.mxu0 0.0
      %1072 = vmatprep.subr.mxu0 0.0
      %1073 = vmatpush1.msra.mxu0 0.0
      %1074 = vmatprep.subr.mxu0 0.0
      %1075 = vmatpush1.msra.mxu0 0.0
      %1076 = vmatprep.subr.mxu0 0.0
      %1077 = vmatpush1.msra.mxu0 0.0
      %1078 = vmatprep.subr.mxu0 0.0
      %1079 = vmatpush1.msra.mxu0 0.0
      %1080 = vmatprep.subr.mxu0 0.0
      %1081 = vmatpush1.msra.mxu0 0.0
      %1082 = vmatprep.subr.mxu0 0.0
      %1083 = vmatpush1.msra.mxu0 0.0
      %1084 = vmatprep.subr.mxu0 0.0
      %1085 = vmatpush1.msra.mxu0 0.0
      %1086 = vmatprep.subr.mxu0 0.0
      %1087 = vmatpush1.msra.mxu0 0.0
      %1088 = vmatprep.subr.mxu0 0.0
      %1089 = vmatpush1.msra.mxu0 0.0
      %1090 = vmatprep.subr.mxu0 0.0
      %1091 = vmatpush1.msra.mxu0 0.0
      %1092 = vmatprep.subr.mxu0 0.0
      %1093 = vmatpush1.msra.mxu0 0.0
      %1094 = vmatprep.subr.mxu0 0.0
      %1095 = vmatpush1.msra.mxu0 0.0
      %1096 = vmatprep.subr.mxu0 0.0
      %1097 = vmatpush1.msra.mxu0 0.0
      %1098 = vmatprep.subr.mxu0 0.0
      %1099 = vmatpush1.msra.mxu0 0.0
      %1100 = vmatprep.subr.mxu0 0.0
      %1101 = vmatpush1.msra.mxu0 0.0
      %1102 = vmatprep.subr.mxu0 0.0
      %1103 = vmatpush1.msra.mxu0 0.0
      %1104 = vmatprep.subr.mxu0 0.0
      %1105 = vmatpush1.msra.mxu0 0.0
      %1106 = vmatprep.subr.mxu0 0.0
      %1107 = vmatpush1.msra.mxu0 0.0
      %1108 = vmatprep.subr.mxu0 0.0
      %1109 = vmatpush1.msra.mxu0 0.0
      %1110 = vmatprep.subr.mxu0 0.0
      %1111 = vmatpush1.msra.mxu0 0.0
      %1112 = vmatprep.subr.mxu0 0.0
      %1113 = vmatpush1.msra.mxu0 0.0
      %1114 = vmatprep.mubr.f32.mxu0 0.0
      %1115 = vmatmul.mubr.f32.gmra.mrb[0].mxu0 %v1048
      %v1116 = vpop.f32.mrb[0].mxu0
      %v1117 = vadd.f32 %v1045, %v1116
      %v1118 = vpop.f32.mrb[0].mxu0
      %v1119 = vadd.f32 %v1045, %v1118
      %1120 = vdwg.mxu0
      %1121 = vmatprep.subr.mxu0 %v990
      %1122 = vmatpush1.msra.mxu0 %v989
      %1123 = vmatprep.subr.mxu0 %v996
      %1124 = vmatpush1.msra.mxu0 %v995
      %1125 = vmatprep.subr.mxu0 %v1002
      %1126 = vmatpush1.msra.mxu0 %v1001
      %1127 = vmatprep.subr.mxu0 %v1008
      %1128 = vmatpush1.msra.mxu0 %v1007
      %1129 = vmatprep.subr.mxu0 %v1014
      %1130 = vmatpush1.msra.mxu0 %v1013
      %1131 = vmatprep.subr.mxu0 %v1020
      %1132 = vmatpush1.msra.mxu0 %v1019
      %1133 = vmatprep.subr.mxu0 %v1026
      %1134 = vmatpush1.msra.mxu0 %v1025
      %1135 = vmatprep.subr.mxu0 %v1032
      %1136 = vmatpush1.msra.mxu0 %v1031
      %1137 = vmatprep.subr.mxu0 %v1038
      %1138 = vmatpush1.msra.mxu0 %v1037
      %1139 = vmatprep.subr.mxu0 0.0
      %1140 = vmatpush1.msra.mxu0 0.0
      %1141 = vmatprep.subr.mxu0 0.0
      %1142 = vmatpush1.msra.mxu0 0.0
      %1143 = vmatprep.subr.mxu0 0.0
      %1144 = vmatpush1.msra.mxu0 0.0
      %1145 = vmatprep.subr.mxu0 0.0
      %1146 = vmatpush1.msra.mxu0 0.0
      %1147 = vmatprep.subr.mxu0 0.0
      %1148 = vmatpush1.msra.mxu0 0.0
      %1149 = vmatprep.subr.mxu0 0.0
      %1150 = vmatpush1.msra.mxu0 0.0
      %1151 = vmatprep.subr.mxu0 0.0
      %1152 = vmatpush1.msra.mxu0 0.0
      %1153 = vmatprep.subr.mxu0 0.0
      %1154 = vmatpush1.msra.mxu0 0.0
      %1155 = vmatprep.subr.mxu0 0.0
      %1156 = vmatpush1.msra.mxu0 0.0
      %1157 = vmatprep.subr.mxu0 0.0
      %1158 = vmatpush1.msra.mxu0 0.0
      %1159 = vmatprep.subr.mxu0 0.0
      %1160 = vmatpush1.msra.mxu0 0.0
      %1161 = vmatprep.subr.mxu0 0.0
      %1162 = vmatpush1.msra.mxu0 0.0
      %1163 = vmatprep.subr.mxu0 0.0
      %1164 = vmatpush1.msra.mxu0 0.0
      %1165 = vmatprep.subr.mxu0 0.0
      %1166 = vmatpush1.msra.mxu0 0.0
      %1167 = vmatprep.subr.mxu0 0.0
      %1168 = vmatpush1.msra.mxu0 0.0
      %1169 = vmatprep.subr.mxu0 0.0
      %1170 = vmatpush1.msra.mxu0 0.0
      %1171 = vmatprep.subr.mxu0 0.0
      %1172 = vmatpush1.msra.mxu0 0.0
      %1173 = vmatprep.subr.mxu0 0.0
      %1174 = vmatpush1.msra.mxu0 0.0
      %1175 = vmatprep.subr.mxu0 0.0
      %1176 = vmatpush1.msra.mxu0 0.0
      %1177 = vmatprep.subr.mxu0 0.0
      %1178 = vmatpush1.msra.mxu0 0.0
      %1179 = vmatprep.subr.mxu0 0.0
      %1180 = vmatpush1.msra.mxu0 0.0
      %1181 = vmatprep.subr.mxu0 0.0
      %1182 = vmatpush1.msra.mxu0 0.0
      %1183 = vmatprep.subr.mxu0 0.0
      %1184 = vmatpush1.msra.mxu0 0.0
      %1185 = vmatprep.mubr.f32.mxu0 0.0
      %1186 = vmatmul.mubr.f32.gmra.mrb[0].mxu0 %v1048
      %v1187 = vpop.f32.mrb[0].mxu0
      %v1188 = vadd.f32 %v1045, %v1187
      %v1189 = vpop.f32.mrb[0].mxu0
      %v1190 = vadd.f32 %v1045, %v1189
      %1191 = vdwg.mxu0
      %1192 = vmatprep.subr.mxu0 %v992
      %1193 = vmatpush1.msra.mxu0 %v991
      %1194 = vmatprep.subr.mxu0 %v998
      %1195 = vmatpush1.msra.mxu0 %v997
      %1196 = vmatprep.subr.mxu0 %v1004
      %1197 = vmatpush1.msra.mxu0 %v1003
      %1198 = vmatprep.subr.mxu0 %v1010
      %1199 = vmatpush1.msra.mxu0 %v1009
      %1200 = vmatprep.subr.mxu0 %v1016
      %1201 = vmatpush1.msra.mxu0 %v1015
      %1202 = vmatprep.subr.mxu0 %v1022
      %1203 = vmatpush1.msra.mxu0 %v1021
      %1204 = vmatprep.subr.mxu0 %v1028
      %1205 = vmatpush1.msra.mxu0 %v1027
      %1206 = vmatprep.subr.mxu0 %v1034
      %1207 = vmatpush1.msra.mxu0 %v1033
      %1208 = vmatprep.subr.mxu0 %v1040
      %1209 = vmatpush1.msra.mxu0 %v1039
      %1210 = vmatprep.subr.mxu0 0.0
      %1211 = vmatpush1.msra.mxu0 0.0
      %1212 = vmatprep.subr.mxu0 0.0
      %1213 = vmatpush1.msra.mxu0 0.0
      %1214 = vmatprep.subr.mxu0 0.0
      %1215 = vmatpush1.msra.mxu0 0.0
      %1216 = vmatprep.subr.mxu0 0.0
      %1217 = vmatpush1.msra.mxu0 0.0
      %1218 = vmatprep.subr.mxu0 0.0
      %1219 = vmatpush1.msra.mxu0 0.0
      %1220 = vmatprep.subr.mxu0 0.0
      %1221 = vmatpush1.msra.mxu0 0.0
      %1222 = vmatprep.subr.mxu0 0.0
      %1223 = vmatpush1.msra.mxu0 0.0
      %1224 = vmatprep.subr.mxu0 0.0
      %1225 = vmatpush1.msra.mxu0 0.0
      %1226 = vmatprep.subr.mxu0 0.0
      %1227 = vmatpush1.msra.mxu0 0.0
      %1228 = vmatprep.subr.mxu0 0.0
      %1229 = vmatpush1.msra.mxu0 0.0
      %1230 = vmatprep.subr.mxu0 0.0
      %1231 = vmatpush1.msra.mxu0 0.0
      %1232 = vmatprep.subr.mxu0 0.0
      %1233 = vmatpush1.msra.mxu0 0.0
      %1234 = vmatprep.subr.mxu0 0.0
      %1235 = vmatpush1.msra.mxu0 0.0
      %1236 = vmatprep.subr.mxu0 0.0
      %1237 = vmatpush1.msra.mxu0 0.0
      %1238 = vmatprep.subr.mxu0 0.0
      %1239 = vmatpush1.msra.mxu0 0.0
      %1240 = vmatprep.subr.mxu0 0.0
      %1241 = vmatpush1.msra.mxu0 0.0
      %1242 = vmatprep.subr.mxu0 0.0
      %1243 = vmatpush1.msra.mxu0 0.0
      %1244 = vmatprep.subr.mxu0 0.0
      %1245 = vmatpush1.msra.mxu0 0.0
      %1246 = vmatprep.subr.mxu0 0.0
      %1247 = vmatpush1.msra.mxu0 0.0
      %1248 = vmatprep.subr.mxu0 0.0
      %1249 = vmatpush1.msra.mxu0 0.0
      %1250 = vmatprep.subr.mxu0 0.0
      %1251 = vmatpush1.msra.mxu0 0.0
      %1252 = vmatprep.subr.mxu0 0.0
      %1253 = vmatpush1.msra.mxu0 0.0
      %1254 = vmatprep.subr.mxu0 0.0
      %1255 = vmatpush1.msra.mxu0 0.0
      %1256 = vmatprep.mubr.f32.mxu0 0.0
      %1257 = vmatmul.mubr.f32.gmra.mrb[0].mxu0 %v1048
      %v1258 = vpop.f32.mrb[0].mxu0
      %v1259 = vadd.f32 %v1045, %v1258
      %v1260 = vpop.f32.mrb[0].mxu0
      %v1261 = vadd.f32 %v1045, %v1260
      %1262 = vdwg.mxu0
      %v1263 = vmax.f32 %v1117, 0.0
      %v1264 = vmax.f32 %v1119, 0.0
      %v1265 = vmax.f32 %v1188, 0.0
      %v1266 = vmax.f32 %v1190, 0.0
      %v1267 = vmax.f32 %v1259, 0.0
      %v1268 = vmax.f32 %v1261, 0.0
      %1269 = vst [vmem:[%s251] sm:$0xff] %v1263
      %1270 = vst [vmem:[%s251 + $0x8] sm:$0xff] %v1264
      %1271 = vst [vmem:[%s251 + $0x10] sm:$0xff] %v1265
      %1272 = vst [vmem:[%s251 + $0x18] sm:$0xff] %v1266
      %1273 = vst [vmem:[%s251 + $0x20] sm:$0xff] %v1267
      %1274 = vst [vmem:[%s251 + $0x28] sm:$0xff] %v1268
      %p1275 = scmp.lt.s32.totalorder %s17, 1
      %s1276 = scalar_select %p1275, %s17, 1
      %s1277 = smul.addr %s1276, 6
      %s1278 = smul.addr %s1277, 8
      %s1279 = scalar_lea.vmem %s6, %s1278
      // Predicated region
      $region45: #{explainer_forward.1} parent=43 // pred_check
        %p1280 = pneg %p166
      $region46: #{explainer_forward.1} parent=43 // pred_check_branch
        %1282 = sbr.rel (%p1280) target = $region48
      $region47: #{explainer_forward.1} parent=43 // pred_region
        _
      $region48: #{explainer_forward.1} parent=43 // pred_fallthru
        _
    $region44: #{explainer_forward.1} parent=5 // pred_fallthru
      _
    %p1283 = scmp.le.s32.totalorder 2, %s12
    // Predicated region
    $region49: #{explainer_forward.1} parent=5 // pred_check
      %p1284 = pneg %p1283
    $region50: #{explainer_forward.1} parent=5 // pred_check_branch
      %1286 = sbr.rel (%p1284) target = $region52
    $region51: #{explainer_forward.1} parent=5 // pred_region
      %s1287 = ssub.s32 %s12, 2
      // Predicated region
      $region53: #{explainer_forward.1} parent=51 // pred_check
        %p1288 = pneg %p172
      $region54: #{explainer_forward.1} parent=51 // pred_check_branch
        %1290 = sbr.rel (%p1288) target = $region56
      $region55: #{explainer_forward.1} parent=51 // pred_region
        %p1291 = scmp.lt.s32.totalorder %s18, 1
        %s1292 = scalar_select %p1291, %s18, 1
        %s1293 = smul.addr %s1292, 6
        %s1294 = smul.addr %s1293, 8
        %s1295 = scalar_lea.vmem %s6, %s1294
      $region56: #{explainer_forward.1} parent=51 // pred_fallthru
        _
    $region52: #{explainer_forward.1} parent=5 // pred_fallthru
      _
  $region6: #{explainer_forward.1} parent=0 // loop_footer
    %s16 = sadd.s32 1, %s12
  $region7: #{explainer_forward.1} parent=0 // loop_footer_branch
    %11 = sbr.rel target = $region3
  $region8: #{explainer_forward.1} parent=0 // loop_exit
    _

</llo_original>
